<compile_context>
chip_gen: v6e
topology: v6e:2x2x1
jax: 0.10.0
libtpu: 0.0.40
codegen_flags: <defaults>
</compile_context>

<pallas_src>
import math

import jax
import jax.numpy as jnp
from jax import lax
from jax.experimental import pallas as pl
from jax.experimental.pallas import tpu as pltpu


# ------------------------------ kernel body ---------------------------------
def _make_attention_kernel(H, E, D, output_attention, compute_dtype, approx_recip):
    """Fused AttentionLayer body for one (batch, L-tile) grid step."""

    def kernel(xq_ref, xk_ref, xv_ref,
               wq_ref, bq_ref, wk_ref, bk_ref, wv_ref, bv_ref, wo_ref, bo_ref,
               *refs):
        if output_attention:
            y_ref, attn_ref, k_all_ref, v_all_ref = refs
        else:
            y_ref, k_all_ref, v_all_ref = refs

        lt = pl.program_id(1)

        # K/V projections: one full-width matmul per batch, kept resident in
        # VMEM scratch across the inner ("arbitrary") L-tile axis.
        @pl.when(lt == 0)
        def _project_kv():
            xk = xk_ref[0]                                                   # (S, dm)
            xv = xv_ref[0]                                                   # (S, dm)
            k_all_ref[...] = (jnp.dot(xk, wk_ref[...],
                                      preferred_element_type=jnp.float32)
                              + bk_ref[...]).astype(k_all_ref.dtype)         # (S, H*E)
            v_all_ref[...] = (jnp.dot(xv, wv_ref[...],
                                      preferred_element_type=jnp.float32)
                              + bv_ref[...]).astype(v_all_ref.dtype)         # (S, H*D)

        # Q projection for this L tile (1/sqrt(E) already folded into wq/bq).
        xq = xq_ref[0]                                                       # (TL, dm)
        q_all = (jnp.dot(xq, wq_ref[...], preferred_element_type=jnp.float32)
                 + bq_ref[...]).astype(compute_dtype)                        # (TL, H*E)

        k_all = k_all_ref[...]                                               # (S, H*E)
        v_all = v_all_ref[...]                                               # (S, H*D)

        # Per-head attention: static unrolled loop -> static slices.
        ctx_heads = []
        for h in range(H):
            qh = q_all[:, h * E:(h + 1) * E]                                 # (TL, E)
            kh = k_all[:, h * E:(h + 1) * E]                                 # (S, E)
            vh = v_all[:, h * D:(h + 1) * D]                                 # (S, D)

            # scores = qh @ kh^T via contraction dims (no materialized transpose)
            s = lax.dot_general(qh, kh, (((1,), (1,)), ((), ())),
                                preferred_element_type=jnp.float32)          # (TL, S)

            m = jnp.max(s, axis=-1, keepdims=True)
            p = jnp.exp(s - m)
            denom = jnp.sum(p, axis=-1, keepdims=True)
            inv = pl.reciprocal(denom, approx=approx_recip)
            a = p * inv                                                      # (TL, S) f32
            if output_attention:
                attn_ref[0, h] = a.astype(attn_ref.dtype)

            ctx = jnp.dot(a.astype(compute_dtype), vh,
                          preferred_element_type=jnp.float32)                # (TL, D)
            ctx_heads.append(ctx.astype(compute_dtype))

        # Output projection: one wide matmul over all heads (K depth = H*D).
        ctx_all = ctx_heads[0] if H == 1 else jnp.concatenate(ctx_heads, axis=-1)
        y = jnp.dot(ctx_all, wo_ref[...], preferred_element_type=jnp.float32) + bo_ref[...]
        y_ref[0] = y.astype(y_ref.dtype)

    return kernel


# ------------------------------ helpers -------------------------------------
def _pick_l_block(L):
    """Largest L tile <= 512 that divides L (keeps blocks VMEM-friendly)."""
    if L <= 512:
        return L
    for cand in (512, 256, 128, 64, 32, 16, 8):
        if L % cand == 0:
            return cand
    return L


def _estimate_vmem_bytes(l_block, S, dm, H, E, D, compute_dtype, attn_dtype,
                         output_attention):
    cb = jnp.dtype(compute_dtype).itemsize
    ab = jnp.dtype(attn_dtype).itemsize
    acts = 2 * (l_block * dm + 2 * S * dm) * cb            # double-buffered activations
    weights = (2 * dm * H * E + 2 * dm * H * D) * cb + (2 * H * E + H * D + dm) * 4
    y_out = 2 * l_block * dm * 4
    attn_out = (2 * H * l_block * S * ab) if output_attention else 0
    scratch = (S * H * E + S * H * D) * cb
    temps = 4 * l_block * S * 4 + l_block * (H * E + 2 * H * D) * 4
    return acts + weights + y_out + attn_out + scratch + temps


# ------------------------------ AttentionLayer ------------------------------
class AttentionLayerPallas:
    def __init__(self, d_model, n_heads, d_keys=None, d_values=None, *, key,
                 compute_dtype=jnp.bfloat16, output_attention=True,
                 attn_dtype=None):
        d_keys = d_keys or d_model // n_heads
        d_values = d_values or d_model // n_heads
        self.d_model = d_model
        self.n_heads = n_heads
        self.d_keys = d_keys
        self.d_values = d_values
        self.compute_dtype = compute_dtype
        self.output_attention = output_attention
        if attn_dtype is None:
            attn_dtype = (jnp.float32 if jnp.dtype(compute_dtype) == jnp.dtype(jnp.float32)
                          else jnp.bfloat16)
        self.attn_dtype = attn_dtype

        ks = jax.random.split(key, 8)

        def init_linear(kw, kb, fan_in, fan_out):
            # deterministic uniform init ~ torch.nn.Linear default bounds
            bound = 1.0 / math.sqrt(fan_in)
            w = jax.random.uniform(kw, (fan_in, fan_out), jnp.float32, -bound, bound)
            b = jax.random.uniform(kb, (1, fan_out), jnp.float32, -bound, bound)
            return w, b

        # f32 master parameters (also used by the pure-JAX reference).
        self.wq, self.bq = init_linear(ks[0], ks[1], d_model, d_keys * n_heads)
        self.wk, self.bk = init_linear(ks[2], ks[3], d_model, d_keys * n_heads)
        self.wv, self.bv = init_linear(ks[4], ks[5], d_model, d_values * n_heads)
        self.wo, self.bo = init_linear(ks[6], ks[7], d_values * n_heads, d_model)

        # One-time host-side parameter prep for the fused kernel:
        #  * 1/sqrt(E) folded into the query projection (no O(L*S) scaling),
        #  * matmul weights stored in compute_dtype (bf16 by default) -> 2x MXU
        #    throughput and half the weight DMA bytes; biases stay f32 (added
        #    to the f32 matmul accumulators).
        scale = 1.0 / math.sqrt(d_keys)
        cdt = compute_dtype
        self.wq2 = (self.wq * scale).astype(cdt)            # (dm, H*E)
        self.bq2 = self.bq * scale                          # (1, H*E) f32
        self.wk2 = self.wk.astype(cdt)                      # (dm, H*E)
        self.bk2 = self.bk                                  # (1, H*E) f32
        self.wv2 = self.wv.astype(cdt)                      # (dm, H*D)
        self.bv2 = self.bv                                  # (1, H*D) f32
        self.wo2 = self.wo.astype(cdt)                      # (H*D, dm)
        self.bo2 = self.bo                                  # (1, dm) f32

    def __call__(self, queries, keys, values, attn_mask=None, tau=None, delta=None):
        # TODO(synk): attn_mask / causal masking and attention dropout are not
        # applied (inner attention == FullAttention(mask_flag=False), eval mode);
        # tau/delta are unused as in vanilla FullAttention.
        B, L, _ = queries.shape
        _, S, _ = keys.shape
        H, E, D = self.n_heads, self.d_keys, self.d_values
        dm = self.d_model
        cdt = self.compute_dtype

        l_block = _pick_l_block(L)
        n_lt = L // l_block

        kernel = _make_attention_kernel(
            H, E, D, self.output_attention, cdt,
            approx_recip=(jnp.dtype(cdt) != jnp.dtype(jnp.float32)))

        # Cast activations once in the wrapper (halves activation DMA in bf16).
        xq = queries.astype(cdt)
        xk = keys.astype(cdt)
        xv = values.astype(cdt)

        in_specs = [
            pl.BlockSpec((1, l_block, dm), lambda b, lt: (b, lt, 0)),   # queries tile
            pl.BlockSpec((1, S, dm), lambda b, lt: (b, 0, 0)),          # keys (resident per b)
            pl.BlockSpec((1, S, dm), lambda b, lt: (b, 0, 0)),          # values (resident per b)
            # fully-resident weights / biases (constant index_map -> fetched once)
            pl.BlockSpec((dm, H * E), lambda b, lt: (0, 0)),            # wq (scaled, cdt)
            pl.BlockSpec((1, H * E), lambda b, lt: (0, 0)),             # bq (scaled, f32)
            pl.BlockSpec((dm, H * E), lambda b, lt: (0, 0)),            # wk
            pl.BlockSpec((1, H * E), lambda b, lt: (0, 0)),             # bk
            pl.BlockSpec((dm, H * D), lambda b, lt: (0, 0)),            # wv
            pl.BlockSpec((1, H * D), lambda b, lt: (0, 0)),             # bv
            pl.BlockSpec((H * D, dm), lambda b, lt: (0, 0)),            # wo
            pl.BlockSpec((1, dm), lambda b, lt: (0, 0)),                # bo
        ]

        y_shape = jax.ShapeDtypeStruct((B, L, dm), queries.dtype)
        y_spec = pl.BlockSpec((1, l_block, dm), lambda b, lt: (b, lt, 0))
        if self.output_attention:
            out_shape = (y_shape,
                         jax.ShapeDtypeStruct((B, H, L, S), self.attn_dtype))
            out_specs = (y_spec,
                         pl.BlockSpec((1, H, l_block, S), lambda b, lt: (b, 0, lt, 0)))
        else:
            out_shape = y_shape
            out_specs = y_spec

        scratch_shapes = [
            pltpu.VMEM((S, H * E), cdt),    # K for all heads, resident across L tiles
            pltpu.VMEM((S, H * D), cdt),    # V for all heads, resident across L tiles
        ]

        # Raise the scoped-VMEM limit only when the block footprint needs it.
        # TODO(synk): on v7x (64 MiB physical) prefer shrinking l_block over
        # raising the limit past ~48 MiB.
        cp_kwargs = dict(dimension_semantics=("parallel", "arbitrary"))
        vmem_est = _estimate_vmem_bytes(l_block, S, dm, H, E, D, cdt,
                                        self.attn_dtype, self.output_attention)
        if vmem_est > 32 * 1024 * 1024:
            cp_kwargs["vmem_limit_bytes"] = int(min(vmem_est + (8 << 20), 100 * 1024 * 1024))

        outs = pl.pallas_call(
            kernel,
            out_shape=out_shape,
            grid=(B, n_lt),
            in_specs=in_specs,
            out_specs=out_specs,
            scratch_shapes=scratch_shapes,
            compiler_params=pltpu.CompilerParams(**cp_kwargs),
        )(xq, xk, xv,
          self.wq2, self.bq2, self.wk2, self.bk2, self.wv2, self.bv2,
          self.wo2, self.bo2)

        if self.output_attention:
            y, attn = outs
            return y, attn
        return outs, None


# --------------------------- pure-JAX reference -----------------------------
def reference_forward(layer, queries, keys, values):
    B, L, _ = queries.shape
    _, S, _ = keys.shape
    H, E, D = layer.n_heads, layer.d_keys, layer.d_values
    q = (queries @ layer.wq + layer.bq).reshape(B, L, H, E)
    k = (keys @ layer.wk + layer.bk).reshape(B, S, H, E)
    v = (values @ layer.wv + layer.bv).reshape(B, S, H, D)
    scores = jnp.einsum("blhe,bshe->bhls", q, k) / math.sqrt(E)
    a = jax.nn.softmax(scores, axis=-1)
    out = jnp.einsum("bhls,bshd->blhd", a, v).reshape(B, L, H * D)
    y = out @ layer.wo + layer.bo
    return y, a


if __name__ == "__main__":
    B, L, S, d_model, n_heads = 2, 8, 8, 32, 4

    key = jax.random.PRNGKey(0)
    k_param, kq, kk, kv = jax.random.split(key, 4)

    queries = jax.random.normal(kq, (B, L, d_model), jnp.float32)
    keys = jax.random.normal(kk, (B, S, d_model), jnp.float32)
    values = jax.random.normal(kv, (B, S, d_model), jnp.float32)

    # --- fast path: bf16 matmul operands, bf16 attention writeback (default) ---
    layer = AttentionLayerPallas(d_model, n_heads, key=k_param)
    out, attn = layer(queries, keys, values, attn_mask=None)
    out = jax.block_until_ready(out)
    attn = jax.block_until_ready(attn)

    ref_out, ref_attn = reference_forward(layer, queries, keys, values)
    assert out.shape == (B, L, d_model)
    assert attn.shape == (B, n_heads, L, S)
    assert jnp.allclose(out, ref_out, atol=3e-2, rtol=3e-2)
    assert jnp.allclose(attn.astype(jnp.float32), ref_attn, atol=3e-2, rtol=3e-2)

    # --- exact path: f32 matmuls, exact reciprocal, f32 attention output ---
    layer32 = AttentionLayerPallas(d_model, n_heads, key=k_param,
                                   compute_dtype=jnp.float32)
    out32, attn32 = layer32(queries, keys, values, attn_mask=None)
    out32 = jax.block_until_ready(out32)
    attn32 = jax.block_until_ready(attn32)
    assert jnp.allclose(out32, ref_out, atol=1e-4, rtol=1e-4)
    assert jnp.allclose(attn32, ref_attn, atol=1e-4, rtol=1e-4)

    print("KERNEL_OK")
</pallas_src>

<mosaic_0001>
module attributes {stable_mosaic.version = 11 : i64} {
  func.func @kernel(%arg0: i32, %arg1: i32, %arg2: memref<1x8x32xbf16, #tpu.memory_space<vmem>>, %arg3: memref<1x8x32xbf16, #tpu.memory_space<vmem>>, %arg4: memref<1x8x32xbf16, #tpu.memory_space<vmem>>, %arg5: memref<32x32xbf16, #tpu.memory_space<vmem>>, %arg6: memref<1x32xf32, #tpu.memory_space<vmem>>, %arg7: memref<32x32xbf16, #tpu.memory_space<vmem>>, %arg8: memref<1x32xf32, #tpu.memory_space<vmem>>, %arg9: memref<32x32xbf16, #tpu.memory_space<vmem>>, %arg10: memref<1x32xf32, #tpu.memory_space<vmem>>, %arg11: memref<32x32xbf16, #tpu.memory_space<vmem>>, %arg12: memref<1x32xf32, #tpu.memory_space<vmem>>, %arg13: memref<1x8x32xf32, #tpu.memory_space<vmem>>, %arg14: memref<1x4x8x8xbf16, #tpu.memory_space<vmem>>, %arg15: memref<8x32xbf16, #tpu.memory_space<vmem>>, %arg16: memref<8x32xbf16, #tpu.memory_space<vmem>>) attributes {dimension_semantics = [#tpu.dimension_semantics<parallel>, #tpu.dimension_semantics<arbitrary>], iteration_bounds = array<i64: 2, 1>, scalar_prefetch = 0 : i64, scratch_operands = 2 : i64, tpu.core_type = #tpu.core_type<tc>, window_params = [{transform_indices = @transform_0, window_bounds = array<i64: 1, 8, 32>}, {transform_indices = @transform_1, window_bounds = array<i64: 1, 8, 32>}, {transform_indices = @transform_2, window_bounds = array<i64: 1, 8, 32>}, {pipeline_mode = #tpu.pipeline_mode<synchronous>, transform_indices = @transform_3, window_bounds = array<i64: 32, 32>}, {pipeline_mode = #tpu.pipeline_mode<synchronous>, transform_indices = @transform_4, window_bounds = array<i64: 1, 32>}, {pipeline_mode = #tpu.pipeline_mode<synchronous>, transform_indices = @transform_5, window_bounds = array<i64: 32, 32>}, {pipeline_mode = #tpu.pipeline_mode<synchronous>, transform_indices = @transform_6, window_bounds = array<i64: 1, 32>}, {pipeline_mode = #tpu.pipeline_mode<synchronous>, transform_indices = @transform_7, window_bounds = array<i64: 32, 32>}, {pipeline_mode = #tpu.pipeline_mode<synchronous>, transform_indices = @transform_8, window_bounds = array<i64: 1, 32>}, {pipeline_mode = #tpu.pipeline_mode<synchronous>, transform_indices = @transform_9, window_bounds = array<i64: 32, 32>}, {pipeline_mode = #tpu.pipeline_mode<synchronous>, transform_indices = @transform_10, window_bounds = array<i64: 1, 32>}, {transform_indices = @transform_11, window_bounds = array<i64: 1, 8, 32>}, {transform_indices = @transform_12, window_bounds = array<i64: 1, 4, 8, 8>}]} {
    %c0_i32 = arith.constant 0 : i32
    %0 = arith.cmpi eq, %arg1, %c0_i32 : i32
    %1 = arith.extui %0 : i1 to i32
    %c0_i32_0 = arith.constant 0 : i32
    %2 = arith.cmpi ne, %1, %c0_i32_0 : i32
    scf.if %2 {
      %c0_48 = arith.constant 0 : index
      %c0_49 = arith.constant 0 : index
      %c0_50 = arith.constant 0 : index
      %106 = vector.load %arg3[%c0_48, %c0_49, %c0_50] : memref<1x8x32xbf16, #tpu.memory_space<vmem>>, vector<1x8x32xbf16>
      %107 = vector.shape_cast %106 : vector<1x8x32xbf16> to vector<8x32xbf16>
      %c0_51 = arith.constant 0 : index
      %c0_52 = arith.constant 0 : index
      %c0_53 = arith.constant 0 : index
      %108 = vector.load %arg4[%c0_51, %c0_52, %c0_53] : memref<1x8x32xbf16, #tpu.memory_space<vmem>>, vector<1x8x32xbf16>
      %109 = vector.shape_cast %108 : vector<1x8x32xbf16> to vector<8x32xbf16>
      %c0_54 = arith.constant 0 : index
      %c0_55 = arith.constant 0 : index
      %110 = vector.load %arg7[%c0_54, %c0_55] : memref<32x32xbf16, #tpu.memory_space<vmem>>, vector<32x32xbf16>
      %cst_56 = arith.constant dense<0.000000e+00> : vector<8x32xf32>
      %111 = tpu.matmul %107, %110, %cst_56 {dimension_numbers = #tpu.dot_dimension_numbers<[1], [0], [0], [1], [0, 0, 1, 1], [], []>} : vector<8x32xbf16>, vector<32x32xbf16>, vector<8x32xf32> -> vector<8x32xf32>
      %c0_57 = arith.constant 0 : index
      %c0_58 = arith.constant 0 : index
      %112 = vector.load %arg8[%c0_57, %c0_58] : memref<1x32xf32, #tpu.memory_space<vmem>>, vector<1x32xf32>
      %113 = vector.broadcast %112 : vector<1x32xf32> to vector<8x32xf32>
      %114 = arith.addf %111, %113 : vector<8x32xf32>
      %115 = arith.truncf %114 : vector<8x32xf32> to vector<8x32xbf16>
      %c0_59 = arith.constant 0 : index
      %c0_60 = arith.constant 0 : index
      %116 = vector.load %arg15[%c0_59, %c0_60] : memref<8x32xbf16, #tpu.memory_space<vmem>>, vector<8x32xbf16>
      tpu.vector_store %arg15[%c0_59, %c0_60], %115 {strides = array<i32>} : memref<8x32xbf16, #tpu.memory_space<vmem>>, vector<8x32xbf16>,
      %c0_61 = arith.constant 0 : index
      %c0_62 = arith.constant 0 : index
      %117 = vector.load %arg9[%c0_61, %c0_62] : memref<32x32xbf16, #tpu.memory_space<vmem>>, vector<32x32xbf16>
      %cst_63 = arith.constant dense<0.000000e+00> : vector<8x32xf32>
      %118 = tpu.matmul %109, %117, %cst_63 {dimension_numbers = #tpu.dot_dimension_numbers<[1], [0], [0], [1], [0, 0, 1, 1], [], []>} : vector<8x32xbf16>, vector<32x32xbf16>, vector<8x32xf32> -> vector<8x32xf32>
      %c0_64 = arith.constant 0 : index
      %c0_65 = arith.constant 0 : index
      %119 = vector.load %arg10[%c0_64, %c0_65] : memref<1x32xf32, #tpu.memory_space<vmem>>, vector<1x32xf32>
      %120 = vector.broadcast %119 : vector<1x32xf32> to vector<8x32xf32>
      %121 = arith.addf %118, %120 : vector<8x32xf32>
      %122 = arith.truncf %121 : vector<8x32xf32> to vector<8x32xbf16>
      %c0_66 = arith.constant 0 : index
      %c0_67 = arith.constant 0 : index
      %123 = vector.load %arg16[%c0_66, %c0_67] : memref<8x32xbf16, #tpu.memory_space<vmem>>, vector<8x32xbf16>
      tpu.vector_store %arg16[%c0_66, %c0_67], %122 {strides = array<i32>} : memref<8x32xbf16, #tpu.memory_space<vmem>>, vector<8x32xbf16>,
    } else {
    }
    %c0 = arith.constant 0 : index
    %c0_1 = arith.constant 0 : index
    %c0_2 = arith.constant 0 : index
    %3 = vector.load %arg2[%c0, %c0_1, %c0_2] : memref<1x8x32xbf16, #tpu.memory_space<vmem>>, vector<1x8x32xbf16>
    %4 = vector.shape_cast %3 : vector<1x8x32xbf16> to vector<8x32xbf16>
    %c0_3 = arith.constant 0 : index
    %c0_4 = arith.constant 0 : index
    %5 = vector.load %arg5[%c0_3, %c0_4] : memref<32x32xbf16, #tpu.memory_space<vmem>>, vector<32x32xbf16>
    %cst = arith.constant dense<0.000000e+00> : vector<8x32xf32>
    %6 = tpu.matmul %4, %5, %cst {dimension_numbers = #tpu.dot_dimension_numbers<[1], [0], [0], [1], [0, 0, 1, 1], [], []>} : vector<8x32xbf16>, vector<32x32xbf16>, vector<8x32xf32> -> vector<8x32xf32>
    %c0_5 = arith.constant 0 : index
    %c0_6 = arith.constant 0 : index
    %7 = vector.load %arg6[%c0_5, %c0_6] : memref<1x32xf32, #tpu.memory_space<vmem>>, vector<1x32xf32>
    %8 = vector.broadcast %7 : vector<1x32xf32> to vector<8x32xf32>
    %9 = arith.addf %6, %8 : vector<8x32xf32>
    %10 = arith.truncf %9 : vector<8x32xf32> to vector<8x32xbf16>
    %c0_7 = arith.constant 0 : index
    %c0_8 = arith.constant 0 : index
    %11 = vector.load %arg15[%c0_7, %c0_8] : memref<8x32xbf16, #tpu.memory_space<vmem>>, vector<8x32xbf16>
    %c0_9 = arith.constant 0 : index
    %c0_10 = arith.constant 0 : index
    %12 = vector.load %arg16[%c0_9, %c0_10] : memref<8x32xbf16, #tpu.memory_space<vmem>>, vector<8x32xbf16>
    %13 = vector.extract_strided_slice %10 {offsets = [0, 0], sizes = [8, 8], strides = [1, 1]} : vector<8x32xbf16> to vector<8x8xbf16>
    %14 = vector.extract_strided_slice %11 {offsets = [0, 0], sizes = [8, 8], strides = [1, 1]} : vector<8x32xbf16> to vector<8x8xbf16>
    %15 = vector.extract_strided_slice %12 {offsets = [0, 0], sizes = [8, 8], strides = [1, 1]} : vector<8x32xbf16> to vector<8x8xbf16>
    %cst_11 = arith.constant dense<0.000000e+00> : vector<8x8xf32>
    %16 = tpu.matmul %13, %14, %cst_11 {dimension_numbers = #tpu.dot_dimension_numbers<[1], [1], [0], [0], [0, 0, 1, 0], [], []>} : vector<8x8xbf16>, vector<8x8xbf16>, vector<8x8xf32> -> vector<8x8xf32>
    %cst_12 = arith.constant dense<0xFF800000> : vector<8xf32>
    %17 = vector.multi_reduction <maximumf>, %16, %cst_12 [1] : vector<8x8xf32> to vector<8xf32>
    %18 = vector.shape_cast %17 : vector<8xf32> to vector<8x1xf32>
    %19 = vector.broadcast %18 : vector<8x1xf32> to vector<8x8xf32>
    %20 = arith.subf %16, %19 : vector<8x8xf32>
    %21 = math.exp %20 : vector<8x8xf32>
    %cst_13 = arith.constant dense<0.000000e+00> : vector<8xf32>
    %22 = vector.multi_reduction <add>, %21, %cst_13 [1] : vector<8x8xf32> to vector<8xf32>
    %23 = vector.shape_cast %22 : vector<8xf32> to vector<8x1xf32>
    %24 = tpu.reciprocal %23 {approx = true} : vector<8x1xf32> -> vector<8x1xf32>
    %25 = vector.broadcast %24 : vector<8x1xf32> to vector<8x8xf32>
    %26 = arith.mulf %21, %25 : vector<8x8xf32>
    %27 = arith.truncf %26 : vector<8x8xf32> to vector<8x8xbf16>
    %c0_14 = arith.constant 0 : index
    %c0_15 = arith.constant 0 : index
    %c0_16 = arith.constant 0 : index
    %c0_17 = arith.constant 0 : index
    %28 = vector.load %arg14[%c0_14, %c0_15, %c0_16, %c0_17] : memref<1x4x8x8xbf16, #tpu.memory_space<vmem>>, vector<1x1x8x8xbf16>
    %29 = vector.shape_cast %28 : vector<1x1x8x8xbf16> to vector<8x8xbf16>
    %30 = vector.shape_cast %27 : vector<8x8xbf16> to vector<1x1x8x8xbf16>
    tpu.vector_store %arg14[%c0_14, %c0_15, %c0_16, %c0_17], %30 {strides = array<i32>} : memref<1x4x8x8xbf16, #tpu.memory_space<vmem>>, vector<1x1x8x8xbf16>,
    %31 = arith.truncf %26 : vector<8x8xf32> to vector<8x8xbf16>
    %cst_18 = arith.constant dense<0.000000e+00> : vector<8x8xf32>
    %32 = tpu.matmul %31, %15, %cst_18 {dimension_numbers = #tpu.dot_dimension_numbers<[1], [0], [0], [1], [0, 0, 1, 1], [], []>} : vector<8x8xbf16>, vector<8x8xbf16>, vector<8x8xf32> -> vector<8x8xf32>
    %33 = arith.truncf %32 : vector<8x8xf32> to vector<8x8xbf16>
    %34 = vector.extract_strided_slice %10 {offsets = [0, 8], sizes = [8, 8], strides = [1, 1]} : vector<8x32xbf16> to vector<8x8xbf16>
    %35 = vector.extract_strided_slice %11 {offsets = [0, 8], sizes = [8, 8], strides = [1, 1]} : vector<8x32xbf16> to vector<8x8xbf16>
    %36 = vector.extract_strided_slice %12 {offsets = [0, 8], sizes = [8, 8], strides = [1, 1]} : vector<8x32xbf16> to vector<8x8xbf16>
    %cst_19 = arith.constant dense<0.000000e+00> : vector<8x8xf32>
    %37 = tpu.matmul %34, %35, %cst_19 {dimension_numbers = #tpu.dot_dimension_numbers<[1], [1], [0], [0], [0, 0, 1, 0], [], []>} : vector<8x8xbf16>, vector<8x8xbf16>, vector<8x8xf32> -> vector<8x8xf32>
    %cst_20 = arith.constant dense<0xFF800000> : vector<8xf32>
    %38 = vector.multi_reduction <maximumf>, %37, %cst_20 [1] : vector<8x8xf32> to vector<8xf32>
    %39 = vector.shape_cast %38 : vector<8xf32> to vector<8x1xf32>
    %40 = vector.broadcast %39 : vector<8x1xf32> to vector<8x8xf32>
    %41 = arith.subf %37, %40 : vector<8x8xf32>
    %42 = math.exp %41 : vector<8x8xf32>
    %cst_21 = arith.constant dense<0.000000e+00> : vector<8xf32>
    %43 = vector.multi_reduction <add>, %42, %cst_21 [1] : vector<8x8xf32> to vector<8xf32>
    %44 = vector.shape_cast %43 : vector<8xf32> to vector<8x1xf32>
    %45 = tpu.reciprocal %44 {approx = true} : vector<8x1xf32> -> vector<8x1xf32>
    %46 = vector.broadcast %45 : vector<8x1xf32> to vector<8x8xf32>
    %47 = arith.mulf %42, %46 : vector<8x8xf32>
    %48 = arith.truncf %47 : vector<8x8xf32> to vector<8x8xbf16>
    %c0_22 = arith.constant 0 : index
    %c1 = arith.constant 1 : index
    %c0_23 = arith.constant 0 : index
    %c0_24 = arith.constant 0 : index
    %49 = vector.load %arg14[%c0_22, %c1, %c0_23, %c0_24] : memref<1x4x8x8xbf16, #tpu.memory_space<vmem>>, vector<1x1x8x8xbf16>
    %50 = vector.shape_cast %49 : vector<1x1x8x8xbf16> to vector<8x8xbf16>
    %51 = vector.shape_cast %48 : vector<8x8xbf16> to vector<1x1x8x8xbf16>
    tpu.vector_store %arg14[%c0_22, %c1, %c0_23, %c0_24], %51 {strides = array<i32>} : memref<1x4x8x8xbf16, #tpu.memory_space<vmem>>, vector<1x1x8x8xbf16>,
    %52 = arith.truncf %47 : vector<8x8xf32> to vector<8x8xbf16>
    %cst_25 = arith.constant dense<0.000000e+00> : vector<8x8xf32>
    %53 = tpu.matmul %52, %36, %cst_25 {dimension_numbers = #tpu.dot_dimension_numbers<[1], [0], [0], [1], [0, 0, 1, 1], [], []>} : vector<8x8xbf16>, vector<8x8xbf16>, vector<8x8xf32> -> vector<8x8xf32>
    %54 = arith.truncf %53 : vector<8x8xf32> to vector<8x8xbf16>
    %55 = vector.extract_strided_slice %10 {offsets = [0, 16], sizes = [8, 8], strides = [1, 1]} : vector<8x32xbf16> to vector<8x8xbf16>
    %56 = vector.extract_strided_slice %11 {offsets = [0, 16], sizes = [8, 8], strides = [1, 1]} : vector<8x32xbf16> to vector<8x8xbf16>
    %57 = vector.extract_strided_slice %12 {offsets = [0, 16], sizes = [8, 8], strides = [1, 1]} : vector<8x32xbf16> to vector<8x8xbf16>
    %cst_26 = arith.constant dense<0.000000e+00> : vector<8x8xf32>
    %58 = tpu.matmul %55, %56, %cst_26 {dimension_numbers = #tpu.dot_dimension_numbers<[1], [1], [0], [0], [0, 0, 1, 0], [], []>} : vector<8x8xbf16>, vector<8x8xbf16>, vector<8x8xf32> -> vector<8x8xf32>
    %cst_27 = arith.constant dense<0xFF800000> : vector<8xf32>
    %59 = vector.multi_reduction <maximumf>, %58, %cst_27 [1] : vector<8x8xf32> to vector<8xf32>
    %60 = vector.shape_cast %59 : vector<8xf32> to vector<8x1xf32>
    %61 = vector.broadcast %60 : vector<8x1xf32> to vector<8x8xf32>
    %62 = arith.subf %58, %61 : vector<8x8xf32>
    %63 = math.exp %62 : vector<8x8xf32>
    %cst_28 = arith.constant dense<0.000000e+00> : vector<8xf32>
    %64 = vector.multi_reduction <add>, %63, %cst_28 [1] : vector<8x8xf32> to vector<8xf32>
    %65 = vector.shape_cast %64 : vector<8xf32> to vector<8x1xf32>
    %66 = tpu.reciprocal %65 {approx = true} : vector<8x1xf32> -> vector<8x1xf32>
    %67 = vector.broadcast %66 : vector<8x1xf32> to vector<8x8xf32>
    %68 = arith.mulf %63, %67 : vector<8x8xf32>
    %69 = arith.truncf %68 : vector<8x8xf32> to vector<8x8xbf16>
    %c0_29 = arith.constant 0 : index
    %c2 = arith.constant 2 : index
    %c0_30 = arith.constant 0 : index
    %c0_31 = arith.constant 0 : index
    %70 = vector.load %arg14[%c0_29, %c2, %c0_30, %c0_31] : memref<1x4x8x8xbf16, #tpu.memory_space<vmem>>, vector<1x1x8x8xbf16>
    %71 = vector.shape_cast %70 : vector<1x1x8x8xbf16> to vector<8x8xbf16>
    %72 = vector.shape_cast %69 : vector<8x8xbf16> to vector<1x1x8x8xbf16>
    tpu.vector_store %arg14[%c0_29, %c2, %c0_30, %c0_31], %72 {strides = array<i32>} : memref<1x4x8x8xbf16, #tpu.memory_space<vmem>>, vector<1x1x8x8xbf16>,
    %73 = arith.truncf %68 : vector<8x8xf32> to vector<8x8xbf16>
    %cst_32 = arith.constant dense<0.000000e+00> : vector<8x8xf32>
    %74 = tpu.matmul %73, %57, %cst_32 {dimension_numbers = #tpu.dot_dimension_numbers<[1], [0], [0], [1], [0, 0, 1, 1], [], []>} : vector<8x8xbf16>, vector<8x8xbf16>, vector<8x8xf32> -> vector<8x8xf32>
    %75 = arith.truncf %74 : vector<8x8xf32> to vector<8x8xbf16>
    %76 = vector.extract_strided_slice %10 {offsets = [0, 24], sizes = [8, 8], strides = [1, 1]} : vector<8x32xbf16> to vector<8x8xbf16>
    %77 = vector.extract_strided_slice %11 {offsets = [0, 24], sizes = [8, 8], strides = [1, 1]} : vector<8x32xbf16> to vector<8x8xbf16>
    %78 = vector.extract_strided_slice %12 {offsets = [0, 24], sizes = [8, 8], strides = [1, 1]} : vector<8x32xbf16> to vector<8x8xbf16>
    %cst_33 = arith.constant dense<0.000000e+00> : vector<8x8xf32>
    %79 = tpu.matmul %76, %77, %cst_33 {dimension_numbers = #tpu.dot_dimension_numbers<[1], [1], [0], [0], [0, 0, 1, 0], [], []>} : vector<8x8xbf16>, vector<8x8xbf16>, vector<8x8xf32> -> vector<8x8xf32>
    %cst_34 = arith.constant dense<0xFF800000> : vector<8xf32>
    %80 = vector.multi_reduction <maximumf>, %79, %cst_34 [1] : vector<8x8xf32> to vector<8xf32>
    %81 = vector.shape_cast %80 : vector<8xf32> to vector<8x1xf32>
    %82 = vector.broadcast %81 : vector<8x1xf32> to vector<8x8xf32>
    %83 = arith.subf %79, %82 : vector<8x8xf32>
    %84 = math.exp %83 : vector<8x8xf32>
    %cst_35 = arith.constant dense<0.000000e+00> : vector<8xf32>
    %85 = vector.multi_reduction <add>, %84, %cst_35 [1] : vector<8x8xf32> to vector<8xf32>
    %86 = vector.shape_cast %85 : vector<8xf32> to vector<8x1xf32>
    %87 = tpu.reciprocal %86 {approx = true} : vector<8x1xf32> -> vector<8x1xf32>
    %88 = vector.broadcast %87 : vector<8x1xf32> to vector<8x8xf32>
    %89 = arith.mulf %84, %88 : vector<8x8xf32>
    %90 = arith.truncf %89 : vector<8x8xf32> to vector<8x8xbf16>
    %c0_36 = arith.constant 0 : index
    %c3 = arith.constant 3 : index
    %c0_37 = arith.constant 0 : index
    %c0_38 = arith.constant 0 : index
    %91 = vector.load %arg14[%c0_36, %c3, %c0_37, %c0_38] : memref<1x4x8x8xbf16, #tpu.memory_space<vmem>>, vector<1x1x8x8xbf16>
    %92 = vector.shape_cast %91 : vector<1x1x8x8xbf16> to vector<8x8xbf16>
    %93 = vector.shape_cast %90 : vector<8x8xbf16> to vector<1x1x8x8xbf16>
    tpu.vector_store %arg14[%c0_36, %c3, %c0_37, %c0_38], %93 {strides = array<i32>} : memref<1x4x8x8xbf16, #tpu.memory_space<vmem>>, vector<1x1x8x8xbf16>,
    %94 = arith.truncf %89 : vector<8x8xf32> to vector<8x8xbf16>
    %cst_39 = arith.constant dense<0.000000e+00> : vector<8x8xf32>
    %95 = tpu.matmul %94, %78, %cst_39 {dimension_numbers = #tpu.dot_dimension_numbers<[1], [0], [0], [1], [0, 0, 1, 1], [], []>} : vector<8x8xbf16>, vector<8x8xbf16>, vector<8x8xf32> -> vector<8x8xf32>
    %96 = arith.truncf %95 : vector<8x8xf32> to vector<8x8xbf16>
    %97 = tpu.concatenate %33, %54, %75, %96 in 1 : vector<8x8xbf16>, vector<8x8xbf16>, vector<8x8xbf16>, vector<8x8xbf16> -> vector<8x32xbf16>
    %c0_40 = arith.constant 0 : index
    %c0_41 = arith.constant 0 : index
    %98 = vector.load %arg11[%c0_40, %c0_41] : memref<32x32xbf16, #tpu.memory_space<vmem>>, vector<32x32xbf16>
    %cst_42 = arith.constant dense<0.000000e+00> : vector<8x32xf32>
    %99 = tpu.matmul %97, %98, %cst_42 {dimension_numbers = #tpu.dot_dimension_numbers<[1], [0], [0], [1], [0, 0, 1, 1], [], []>} : vector<8x32xbf16>, vector<32x32xbf16>, vector<8x32xf32> -> vector<8x32xf32>
    %c0_43 = arith.constant 0 : index
    %c0_44 = arith.constant 0 : index
    %100 = vector.load %arg12[%c0_43, %c0_44] : memref<1x32xf32, #tpu.memory_space<vmem>>, vector<1x32xf32>
    %101 = vector.broadcast %100 : vector<1x32xf32> to vector<8x32xf32>
    %102 = arith.addf %99, %101 : vector<8x32xf32>
    %c0_45 = arith.constant 0 : index
    %c0_46 = arith.constant 0 : index
    %c0_47 = arith.constant 0 : index
    %103 = vector.load %arg13[%c0_45, %c0_46, %c0_47] : memref<1x8x32xf32, #tpu.memory_space<vmem>>, vector<1x8x32xf32>
    %104 = vector.shape_cast %103 : vector<1x8x32xf32> to vector<8x32xf32>
    %105 = vector.shape_cast %102 : vector<8x32xf32> to vector<1x8x32xf32>
    tpu.vector_store %arg13[%c0_45, %c0_46, %c0_47], %105 {strides = array<i32>} : memref<1x8x32xf32, #tpu.memory_space<vmem>>, vector<1x8x32xf32>,
    return
  }
  func.func @transform_0(%arg0: i32, %arg1: i32) -> (i32, i32, i32) {
    %c0_i32 = arith.constant 0 : i32
    %c0_i32_0 = arith.constant 0 : i32
    return %arg0, %arg1, %c0_i32 : i32, i32, i32
  }
  func.func @transform_1(%arg0: i32, %arg1: i32) -> (i32, i32, i32) {
    %c0_i32 = arith.constant 0 : i32
    %c0_i32_0 = arith.constant 0 : i32
    %c0_i32_1 = arith.constant 0 : i32
    return %arg0, %c0_i32, %c0_i32_0 : i32, i32, i32
  }
  func.func @transform_2(%arg0: i32, %arg1: i32) -> (i32, i32, i32) {
    %c0_i32 = arith.constant 0 : i32
    %c0_i32_0 = arith.constant 0 : i32
    %c0_i32_1 = arith.constant 0 : i32
    return %arg0, %c0_i32, %c0_i32_0 : i32, i32, i32
  }
  func.func @transform_3(%arg0: i32, %arg1: i32) -> (i32, i32) {
    %c0_i32 = arith.constant 0 : i32
    %c0_i32_0 = arith.constant 0 : i32
    %c0_i32_1 = arith.constant 0 : i32
    return %c0_i32, %c0_i32_0 : i32, i32
  }
  func.func @transform_4(%arg0: i32, %arg1: i32) -> (i32, i32) {
    %c0_i32 = arith.constant 0 : i32
    %c0_i32_0 = arith.constant 0 : i32
    %c0_i32_1 = arith.constant 0 : i32
    return %c0_i32, %c0_i32_0 : i32, i32
  }
  func.func @transform_5(%arg0: i32, %arg1: i32) -> (i32, i32) {
    %c0_i32 = arith.constant 0 : i32
    %c0_i32_0 = arith.constant 0 : i32
    %c0_i32_1 = arith.constant 0 : i32
    return %c0_i32, %c0_i32_0 : i32, i32
  }
  func.func @transform_6(%arg0: i32, %arg1: i32) -> (i32, i32) {
    %c0_i32 = arith.constant 0 : i32
    %c0_i32_0 = arith.constant 0 : i32
    %c0_i32_1 = arith.constant 0 : i32
    return %c0_i32, %c0_i32_0 : i32, i32
  }
  func.func @transform_7(%arg0: i32, %arg1: i32) -> (i32, i32) {
    %c0_i32 = arith.constant 0 : i32
    %c0_i32_0 = arith.constant 0 : i32
    %c0_i32_1 = arith.constant 0 : i32
    return %c0_i32, %c0_i32_0 : i32, i32
  }
  func.func @transform_8(%arg0: i32, %arg1: i32) -> (i32, i32) {
    %c0_i32 = arith.constant 0 : i32
    %c0_i32_0 = arith.constant 0 : i32
    %c0_i32_1 = arith.constant 0 : i32
    return %c0_i32, %c0_i32_0 : i32, i32
  }
  func.func @transform_9(%arg0: i32, %arg1: i32) -> (i32, i32) {
    %c0_i32 = arith.constant 0 : i32
    %c0_i32_0 = arith.constant 0 : i32
    %c0_i32_1 = arith.constant 0 : i32
    return %c0_i32, %c0_i32_0 : i32, i32
  }
  func.func @transform_10(%arg0: i32, %arg1: i32) -> (i32, i32) {
    %c0_i32 = arith.constant 0 : i32
    %c0_i32_0 = arith.constant 0 : i32
    %c0_i32_1 = arith.constant 0 : i32
    return %c0_i32, %c0_i32_0 : i32, i32
  }
  func.func @transform_11(%arg0: i32, %arg1: i32) -> (i32, i32, i32) {
    %c0_i32 = arith.constant 0 : i32
    %c0_i32_0 = arith.constant 0 : i32
    return %arg0, %arg1, %c0_i32 : i32, i32, i32
  }
  func.func @transform_12(%arg0: i32, %arg1: i32) -> (i32, i32, i32, i32) {
    %c0_i32 = arith.constant 0 : i32
    %c0_i32_0 = arith.constant 0 : i32
    %c0_i32_1 = arith.constant 0 : i32
    return %arg0, %c0_i32, %arg1, %c0_i32_0 : i32, i32, i32, i32
  }
}

</mosaic_0001>

<llo_original>
// kernel: tpu_custom_call.1
$region0: #{tpu_custom_call.1}
  #allocation0 [shape = 'u32[]', space=smem, size = 0x4, offset = 0x4, fixed_abs, tag = 'smem constant byte address 0x4 - core index']
  #allocation1 [shape = 'u32[144,128]{1,0:T(1,128)}', space=vmem, size = 0x12000, scoped, tag = 'internal scratch']
  #allocation2 [shape = 'bf16[8,32]{1,0:T(8,128)(2,1)}', space=vmem, size = 0x800, scoped, tag = 'scratch operand']
  #allocation3 [shape = 'bf16[8,32]{1,0:T(8,128)(2,1)}', space=vmem, size = 0x800, scoped, tag = 'scratch operand']
  %s0 = inlined_call_operand.hbm [shape: bf16[2,8,32], index: 0, kind: input, shape index: {}]
  %s1 = inlined_call_operand.hbm [shape: bf16[2,8,32], index: 1, kind: input, shape index: {}]
  %s2 = inlined_call_operand.hbm [shape: bf16[2,8,32], index: 2, kind: input, shape index: {}]
  %s3 = inlined_call_operand.hbm [shape: bf16[32,32], index: 3, kind: input, shape index: {}]
  %s4 = inlined_call_operand.hbm [shape: f32[1,32], index: 4, kind: input, shape index: {}]
  %s5 = inlined_call_operand.hbm [shape: bf16[32,32], index: 5, kind: input, shape index: {}]
  %s6 = inlined_call_operand.hbm [shape: f32[1,32], index: 6, kind: input, shape index: {}]
  %s7 = inlined_call_operand.hbm [shape: bf16[32,32], index: 7, kind: input, shape index: {}]
  %s8 = inlined_call_operand.hbm [shape: f32[1,32], index: 8, kind: input, shape index: {}]
  %s9 = inlined_call_operand.vmem [shape: bf16[32,32], index: 9, kind: input, shape index: {}]
  %s10 = inlined_call_operand.vmem [shape: f32[1,32], index: 10, kind: input, shape index: {}]
  %s11 = inlined_call_operand.hbm [shape: f32[2,8,32], index: 11, kind: output, shape index: {0}]
  %s12 = inlined_call_operand.hbm [shape: bf16[2,4,8,8], index: 12, kind: output, shape index: {1}]
  %13 = xla_tuple %s11, %s12
  %s14 = sld [smem:[#allocation0]]
  $region125: #{tpu_custom_call.1} parent=0
    _
  %s16 = ssub.s32 1, %s14
  %s17 = scalar_select 0, %s16, %s14
  $region1: #{tpu_custom_call.1} parent=0
    #allocation4 [shape = 'u8[4096]{0}', space=vmem, size = 0x1000, scoped, tag = 'input window, operand 0']
    #allocation5 [shape = 's32[2]{0}', space=sflag, size = 0x8, scoped, tag = 'scoped memory for tpu_custom_call.1']
    #allocation6 [shape = 's32[2]{0}', space=sflag, size = 0x8, scoped, tag = 'scoped memory for tpu_custom_call.1']
    #allocation7 [shape = 'u8[4096]{0}', space=vmem, size = 0x1000, scoped, tag = 'input window, operand 1']
    #allocation8 [shape = 's32[2]{0}', space=sflag, size = 0x8, scoped, tag = 'scoped memory for tpu_custom_call.1']
    #allocation9 [shape = 'u8[4096]{0}', space=vmem, size = 0x1000, scoped, tag = 'input window, operand 2']
    #allocation10 [shape = 'u8[8192]{0}', space=vmem, size = 0x2000, scoped, tag = 'input window, operand 3, single buffered']
    #allocation11 [shape = 's32[1]{0}', space=sflag, size = 0x4, scoped, tag = 'scoped memory for tpu_custom_call.1']
    #allocation12 [shape = 'u8[512]{0}', space=vmem, size = 0x400, scoped, tag = 'input window, operand 4, single buffered']
    #allocation13 [shape = 'u8[8192]{0}', space=vmem, size = 0x2000, scoped, tag = 'input window, operand 5, single buffered']
    #allocation14 [shape = 's32[1]{0}', space=sflag, size = 0x4, scoped, tag = 'scoped memory for tpu_custom_call.1']
    #allocation15 [shape = 'u8[512]{0}', space=vmem, size = 0x400, scoped, tag = 'input window, operand 6, single buffered']
    #allocation16 [shape = 'u8[8192]{0}', space=vmem, size = 0x2000, scoped, tag = 'input window, operand 7, single buffered']
    #allocation17 [shape = 's32[1]{0}', space=sflag, size = 0x4, scoped, tag = 'scoped memory for tpu_custom_call.1']
    #allocation18 [shape = 'u8[512]{0}', space=vmem, size = 0x400, scoped, tag = 'input window, operand 8, single buffered']
    #allocation19 [shape = 'u8[8192]{0}', space=vmem, size = 0x2000, scoped, tag = 'output window, operand 0']
    #allocation20 [shape = 'u8[16384]{0}', space=vmem, size = 0x4000, scoped, tag = 'output window, operand 1']
    #allocation21 [shape = 's32[2]{0}', space=sflag, size = 0x8, scoped, tag = 'scoped memory for tpu_custom_call.1']
    %18 = vsyncpa [#allocation5], 0
    %s19 = scalar_lea.sflag [#allocation5], 1
    %20 = vsyncpa %s19, 0
    %21 = vsyncpa [#allocation8], 0
    %s22 = scalar_lea.sflag [#allocation8], 1
    %23 = vsyncpa %s22, 0
    %24 = vsyncpa [#allocation11], 0
    %25 = vsyncpa [#allocation14], 0
    %26 = vsyncpa [#allocation17], 0
    %27 = vsyncpa [#allocation6], 0
    %s28 = scalar_lea.sflag [#allocation6], 1
    %29 = vsyncpa %s28, 0
    %30 = vsyncpa [#allocation21], 0
    %s31 = scalar_lea.sflag [#allocation21], 1
    %32 = vsyncpa %s31, 0
    loop: start=0, step=1, limit=4
    $region2: #{tpu_custom_call.1} parent=1 // loop_pre_header
      _
    $region3: #{tpu_custom_call.1} parent=1 // loop_header
      %s34 = sphi 0, %s38
      %p35 = scmp.ge.s32.totalorder %s34, 4
      %s41 = sphi 0, %s53
      %s42 = sphi 0, %s49
      %s43 = sphi 0, %s41
      %s44 = sphi 0, %s42
      %s45 = sphi 0, %s43
      %s46 = sphi 0, %s44
      %s58 = sphi 0, %s60
      %s61 = sphi 0, %s58
      %s62 = sphi 0, %s61
      %s78 = sphi 0, %s62
      %s84 = sphi 0, %s86
      %s87 = sphi 0, %s84
      %s88 = sphi 0, %s87
      %s104 = sphi 0, %s88
      %s110 = sphi 0, %s112
      %s113 = sphi 0, %s110
      %s114 = sphi 0, %s113
      %s130 = sphi 0, %s114
      %s134 = sphi 0, %s134
      %s136 = sphi 0, %s134
      %s137 = sphi 0, %s136
      %s151 = sphi 0, %s137
      %s155 = sphi 0, %s155
      %s157 = sphi 0, %s155
      %s158 = sphi 0, %s157
      %s172 = sphi 0, %s158
      %s176 = sphi 0, %s176
      %s178 = sphi 0, %s176
      %s179 = sphi 0, %s178
      %s193 = sphi 0, %s179
      %s197 = sphi 0, %s197
      %s199 = sphi 0, %s197
      %s200 = sphi 0, %s199
      %s214 = sphi 0, %s200
      %s218 = sphi 0, %s218
      %s220 = sphi 0, %s218
      %s221 = sphi 0, %s220
      %s235 = sphi 0, %s221
      %s239 = sphi 0, %s239
      %s241 = sphi 0, %s239
      %s242 = sphi 0, %s241
      %s256 = sphi 0, %s242
      %s260 = sphi 0, %s260
      %s262 = sphi 0, %s260
      %s263 = sphi 0, %s262
      %s277 = sphi 0, %s263
      %s281 = sphi 0, %s281
      %s283 = sphi 0, %s281
      %s284 = sphi 0, %s283
      %s298 = sphi 0, %s284
      %s306 = sphi 0, %s308
      %s309 = sphi 0, %s306
      %s310 = sphi 0, %s309
      %s326 = sphi 0, %s310
      %s334 = sphi 0, %s336
      %s337 = sphi 0, %s334
      %s338 = sphi 0, %s337
      %s354 = sphi 0, %s338
    $region4: #{tpu_custom_call.1} parent=1 // loop_header_branch
      %37 = sbr.rel (%p35) target = $region8
    $region5: #{tpu_custom_call.1} parent=1 // loop_body
      %s39 = ssub.s32 %s34, 1
      %s40 = ssub.s32 %s34, 2
      %s47 = sadd.s32 1, %s42
      %p48 = scmp.ge.s32.totalorder %s47, 1
      %s49 = scalar_select %p48, 0, %s47
      %s50 = sadd.s32 1, %s41
      %s51 = scalar_select %p48, %s50, %s41
      %p52 = scmp.ge.s32.totalorder %s51, 2
      %s53 = scalar_select %p52, 0, %s51
      %s54 = ssub.s32 %s41, %s53
      %s55 = ssub.s32 %s42, %s49
      %s56 = sor.u32 %s54, %s55
      %p57 = scmp.eq.s32.totalorder %s56, 0
      %s59 = sadd.s32 %s58, 1
      %s60 = scalar_select %p57, %s58, %s59
      %p63 = pneg %p57
      %p64 = scmp.eq.s32.totalorder %s34, 1
      %p65 = por %p63, %p64
      %p66 = scmp.ne.s32.totalorder %s58, %s61
      %p67 = scmp.eq.s32.totalorder %s34, 0
      %p68 = por %p66, %p67
      %p69 = scmp.ne.s32.totalorder %s58, %s61
      %p70 = scmp.eq.s32.totalorder %s39, 1
      %p71 = por %p69, %p70
      %p72 = scmp.ne.s32.totalorder %s61, %s62
      %p73 = scmp.eq.s32.totalorder %s39, 0
      %p74 = por %p72, %p73
      %p75 = scmp.ne.s32.totalorder %s61, %s62
      %p76 = scmp.eq.s32.totalorder %s40, 1
      %p77 = por %p75, %p76
      %p79 = scmp.ne.s32.totalorder %s62, %s78
      %p80 = scmp.eq.s32.totalorder %s40, 0
      %p81 = por %p79, %p80
      %s82 = ssub.s32 %s41, %s53
      %p83 = scmp.eq.s32.totalorder %s82, 0
      %s85 = sadd.s32 %s84, 1
      %s86 = scalar_select %p83, %s84, %s85
      %p89 = pneg %p83
      %p90 = scmp.eq.s32.totalorder %s34, 1
      %p91 = por %p89, %p90
      %p92 = scmp.ne.s32.totalorder %s84, %s87
      %p93 = scmp.eq.s32.totalorder %s34, 0
      %p94 = por %p92, %p93
      %p95 = scmp.ne.s32.totalorder %s84, %s87
      %p96 = scmp.eq.s32.totalorder %s39, 1
      %p97 = por %p95, %p96
      %p98 = scmp.ne.s32.totalorder %s87, %s88
      %p99 = scmp.eq.s32.totalorder %s39, 0
      %p100 = por %p98, %p99
      %p101 = scmp.ne.s32.totalorder %s87, %s88
      %p102 = scmp.eq.s32.totalorder %s40, 1
      %p103 = por %p101, %p102
      %p105 = scmp.ne.s32.totalorder %s88, %s104
      %p106 = scmp.eq.s32.totalorder %s40, 0
      %p107 = por %p105, %p106
      %s108 = ssub.s32 %s41, %s53
      %p109 = scmp.eq.s32.totalorder %s108, 0
      %s111 = sadd.s32 %s110, 1
      %s112 = scalar_select %p109, %s110, %s111
      %p115 = pneg %p109
      %p116 = scmp.eq.s32.totalorder %s34, 1
      %p117 = por %p115, %p116
      %p118 = scmp.ne.s32.totalorder %s110, %s113
      %p119 = scmp.eq.s32.totalorder %s34, 0
      %p120 = por %p118, %p119
      %p121 = scmp.ne.s32.totalorder %s110, %s113
      %p122 = scmp.eq.s32.totalorder %s39, 1
      %p123 = por %p121, %p122
      %p124 = scmp.ne.s32.totalorder %s113, %s114
      %p125 = scmp.eq.s32.totalorder %s39, 0
      %p126 = por %p124, %p125
      %p127 = scmp.ne.s32.totalorder %s113, %s114
      %p128 = scmp.eq.s32.totalorder %s40, 1
      %p129 = por %p127, %p128
      %p131 = scmp.ne.s32.totalorder %s114, %s130
      %p132 = scmp.eq.s32.totalorder %s40, 0
      %p133 = por %p131, %p132
      %s135 = sadd.s32 %s134, 1
      %p138 = scmp.eq.s32.totalorder %s34, 1
      %p139 = scmp.ne.s32.totalorder %s134, %s136
      %p140 = scmp.eq.s32.totalorder %s34, 0
      %p141 = por %p139, %p140
      %p142 = scmp.ne.s32.totalorder %s134, %s136
      %p143 = scmp.eq.s32.totalorder %s39, 1
      %p144 = por %p142, %p143
      %p145 = scmp.ne.s32.totalorder %s136, %s137
      %p146 = scmp.eq.s32.totalorder %s39, 0
      %p147 = por %p145, %p146
      %p148 = scmp.ne.s32.totalorder %s136, %s137
      %p149 = scmp.eq.s32.totalorder %s40, 1
      %p150 = por %p148, %p149
      %p152 = scmp.ne.s32.totalorder %s137, %s151
      %p153 = scmp.eq.s32.totalorder %s40, 0
      %p154 = por %p152, %p153
      %s156 = sadd.s32 %s155, 1
      %p159 = scmp.eq.s32.totalorder %s34, 1
      %p160 = scmp.ne.s32.totalorder %s155, %s157
      %p161 = scmp.eq.s32.totalorder %s34, 0
      %p162 = por %p160, %p161
      %p163 = scmp.ne.s32.totalorder %s155, %s157
      %p164 = scmp.eq.s32.totalorder %s39, 1
      %p165 = por %p163, %p164
      %p166 = scmp.ne.s32.totalorder %s157, %s158
      %p167 = scmp.eq.s32.totalorder %s39, 0
      %p168 = por %p166, %p167
      %p169 = scmp.ne.s32.totalorder %s157, %s158
      %p170 = scmp.eq.s32.totalorder %s40, 1
      %p171 = por %p169, %p170
      %p173 = scmp.ne.s32.totalorder %s158, %s172
      %p174 = scmp.eq.s32.totalorder %s40, 0
      %p175 = por %p173, %p174
      %s177 = sadd.s32 %s176, 1
      %p180 = scmp.eq.s32.totalorder %s34, 1
      %p181 = scmp.ne.s32.totalorder %s176, %s178
      %p182 = scmp.eq.s32.totalorder %s34, 0
      %p183 = por %p181, %p182
      %p184 = scmp.ne.s32.totalorder %s176, %s178
      %p185 = scmp.eq.s32.totalorder %s39, 1
      %p186 = por %p184, %p185
      %p187 = scmp.ne.s32.totalorder %s178, %s179
      %p188 = scmp.eq.s32.totalorder %s39, 0
      %p189 = por %p187, %p188
      %p190 = scmp.ne.s32.totalorder %s178, %s179
      %p191 = scmp.eq.s32.totalorder %s40, 1
      %p192 = por %p190, %p191
      %p194 = scmp.ne.s32.totalorder %s179, %s193
      %p195 = scmp.eq.s32.totalorder %s40, 0
      %p196 = por %p194, %p195
      %s198 = sadd.s32 %s197, 1
      %p201 = scmp.eq.s32.totalorder %s34, 1
      %p202 = scmp.ne.s32.totalorder %s197, %s199
      %p203 = scmp.eq.s32.totalorder %s34, 0
      %p204 = por %p202, %p203
      %p205 = scmp.ne.s32.totalorder %s197, %s199
      %p206 = scmp.eq.s32.totalorder %s39, 1
      %p207 = por %p205, %p206
      %p208 = scmp.ne.s32.totalorder %s199, %s200
      %p209 = scmp.eq.s32.totalorder %s39, 0
      %p210 = por %p208, %p209
      %p211 = scmp.ne.s32.totalorder %s199, %s200
      %p212 = scmp.eq.s32.totalorder %s40, 1
      %p213 = por %p211, %p212
      %p215 = scmp.ne.s32.totalorder %s200, %s214
      %p216 = scmp.eq.s32.totalorder %s40, 0
      %p217 = por %p215, %p216
      %s219 = sadd.s32 %s218, 1
      %p222 = scmp.eq.s32.totalorder %s34, 1
      %p223 = scmp.ne.s32.totalorder %s218, %s220
      %p224 = scmp.eq.s32.totalorder %s34, 0
      %p225 = por %p223, %p224
      %p226 = scmp.ne.s32.totalorder %s218, %s220
      %p227 = scmp.eq.s32.totalorder %s39, 1
      %p228 = por %p226, %p227
      %p229 = scmp.ne.s32.totalorder %s220, %s221
      %p230 = scmp.eq.s32.totalorder %s39, 0
      %p231 = por %p229, %p230
      %p232 = scmp.ne.s32.totalorder %s220, %s221
      %p233 = scmp.eq.s32.totalorder %s40, 1
      %p234 = por %p232, %p233
      %p236 = scmp.ne.s32.totalorder %s221, %s235
      %p237 = scmp.eq.s32.totalorder %s40, 0
      %p238 = por %p236, %p237
      %s240 = sadd.s32 %s239, 1
      %p243 = scmp.eq.s32.totalorder %s34, 1
      %p244 = scmp.ne.s32.totalorder %s239, %s241
      %p245 = scmp.eq.s32.totalorder %s34, 0
      %p246 = por %p244, %p245
      %p247 = scmp.ne.s32.totalorder %s239, %s241
      %p248 = scmp.eq.s32.totalorder %s39, 1
      %p249 = por %p247, %p248
      %p250 = scmp.ne.s32.totalorder %s241, %s242
      %p251 = scmp.eq.s32.totalorder %s39, 0
      %p252 = por %p250, %p251
      %p253 = scmp.ne.s32.totalorder %s241, %s242
      %p254 = scmp.eq.s32.totalorder %s40, 1
      %p255 = por %p253, %p254
      %p257 = scmp.ne.s32.totalorder %s242, %s256
      %p258 = scmp.eq.s32.totalorder %s40, 0
      %p259 = por %p257, %p258
      %s261 = sadd.s32 %s260, 1
      %p264 = scmp.eq.s32.totalorder %s34, 1
      %p265 = scmp.ne.s32.totalorder %s260, %s262
      %p266 = scmp.eq.s32.totalorder %s34, 0
      %p267 = por %p265, %p266
      %p268 = scmp.ne.s32.totalorder %s260, %s262
      %p269 = scmp.eq.s32.totalorder %s39, 1
      %p270 = por %p268, %p269
      %p271 = scmp.ne.s32.totalorder %s262, %s263
      %p272 = scmp.eq.s32.totalorder %s39, 0
      %p273 = por %p271, %p272
      %p274 = scmp.ne.s32.totalorder %s262, %s263
      %p275 = scmp.eq.s32.totalorder %s40, 1
      %p276 = por %p274, %p275
      %p278 = scmp.ne.s32.totalorder %s263, %s277
      %p279 = scmp.eq.s32.totalorder %s40, 0
      %p280 = por %p278, %p279
      %s282 = sadd.s32 %s281, 1
      %p285 = scmp.eq.s32.totalorder %s34, 1
      %p286 = scmp.ne.s32.totalorder %s281, %s283
      %p287 = scmp.eq.s32.totalorder %s34, 0
      %p288 = por %p286, %p287
      %p289 = scmp.ne.s32.totalorder %s281, %s283
      %p290 = scmp.eq.s32.totalorder %s39, 1
      %p291 = por %p289, %p290
      %p292 = scmp.ne.s32.totalorder %s283, %s284
      %p293 = scmp.eq.s32.totalorder %s39, 0
      %p294 = por %p292, %p293
      %p295 = scmp.ne.s32.totalorder %s283, %s284
      %p296 = scmp.eq.s32.totalorder %s40, 1
      %p297 = por %p295, %p296
      %p299 = scmp.ne.s32.totalorder %s284, %s298
      %p300 = scmp.eq.s32.totalorder %s40, 0
      %p301 = por %p299, %p300
      %s302 = ssub.s32 %s41, %s53
      %s303 = ssub.s32 %s42, %s49
      %s304 = sor.u32 %s302, %s303
      %p305 = scmp.eq.s32.totalorder %s304, 0
      %s307 = sadd.s32 %s306, 1
      %s308 = scalar_select %p305, %s306, %s307
      %p311 = pneg %p305
      %p312 = scmp.eq.s32.totalorder %s34, 1
      %p313 = por %p311, %p312
      %p314 = scmp.ne.s32.totalorder %s306, %s309
      %p315 = scmp.eq.s32.totalorder %s34, 0
      %p316 = por %p314, %p315
      %p317 = scmp.ne.s32.totalorder %s306, %s309
      %p318 = scmp.eq.s32.totalorder %s39, 1
      %p319 = por %p317, %p318
      %p320 = scmp.ne.s32.totalorder %s309, %s310
      %p321 = scmp.eq.s32.totalorder %s39, 0
      %p322 = por %p320, %p321
      %p323 = scmp.ne.s32.totalorder %s309, %s310
      %p324 = scmp.eq.s32.totalorder %s40, 1
      %p325 = por %p323, %p324
      %p327 = scmp.ne.s32.totalorder %s310, %s326
      %p328 = scmp.eq.s32.totalorder %s40, 0
      %p329 = por %p327, %p328
      %s330 = ssub.s32 %s41, %s53
      %s331 = ssub.s32 %s42, %s49
      %s332 = sor.u32 %s330, %s331
      %p333 = scmp.eq.s32.totalorder %s332, 0
      %s335 = sadd.s32 %s334, 1
      %s336 = scalar_select %p333, %s334, %s335
      %p339 = pneg %p333
      %p340 = scmp.eq.s32.totalorder %s34, 1
      %p341 = por %p339, %p340
      %p342 = scmp.ne.s32.totalorder %s334, %s337
      %p343 = scmp.eq.s32.totalorder %s34, 0
      %p344 = por %p342, %p343
      %p345 = scmp.ne.s32.totalorder %s334, %s337
      %p346 = scmp.eq.s32.totalorder %s39, 1
      %p347 = por %p345, %p346
      %p348 = scmp.ne.s32.totalorder %s337, %s338
      %p349 = scmp.eq.s32.totalorder %s39, 0
      %p350 = por %p348, %p349
      %p351 = scmp.ne.s32.totalorder %s337, %s338
      %p352 = scmp.eq.s32.totalorder %s40, 1
      %p353 = por %p351, %p352
      %p355 = scmp.ne.s32.totalorder %s338, %s354
      %p356 = scmp.eq.s32.totalorder %s40, 0
      %p357 = por %p355, %p356
      %p358 = scmp.le.s32.totalorder 1, %s34
      %p359 = scmp.lt.s32.totalorder %s34, 3
      %p360 = pnand %p358, %p359
      %p361 = pneg %p360
      // Predicated region
      $region9: #{tpu_custom_call.1} parent=5 // pred_check
        _
      $region10: #{tpu_custom_call.1} parent=5 // pred_check_branch
        %363 = sbr.rel (%p360) target = $region12
      $region11: #{tpu_custom_call.1} parent=5 // pred_region
        %s364 = ssub.s32 %s34, 1
        // Predicated region
        $region13: #{tpu_custom_call.1} parent=11 // pred_check
          %p365 = pneg %p147
        $region14: #{tpu_custom_call.1} parent=11 // pred_check_branch
          %367 = sbr.rel (%p365) target = $region16
        $region15: #{tpu_custom_call.1} parent=11 // pred_region
          %s369 = ssub.s32 256, 256
          %370 = vsyncadd [#allocation11], %s369
          %s371 = sshll.u32 [#allocation10], 4
          %s372 = int_to_ptr.vmem [resolvable:$true] %s371
          %377 = dma.hbm_to_vmem [thread:$0]  %s3, 256, %s372, [#allocation11], 64, 64, 4
        $region16: #{tpu_custom_call.1} parent=11 // pred_fallthru
          _
        // Predicated region
        $region17: #{tpu_custom_call.1} parent=11 // pred_check
          %p378 = pneg %p168
        $region18: #{tpu_custom_call.1} parent=11 // pred_check_branch
          %380 = sbr.rel (%p378) target = $region20
        $region19: #{tpu_custom_call.1} parent=11 // pred_region
          %s382 = ssub.s32 16, 16
          %383 = vsyncadd [#allocation11], %s382
          %s385 = sshll.u32 [#allocation12], 4
          %s386 = int_to_ptr.vmem [resolvable:$true] %s385
          %388 = dma.hbm_to_vmem [thread:$0]  %s4, 16, %s386, [#allocation11]
        $region20: #{tpu_custom_call.1} parent=11 // pred_fallthru
          _
        // Predicated region
        $region21: #{tpu_custom_call.1} parent=11 // pred_check
          %p389 = pneg %p189
        $region22: #{tpu_custom_call.1} parent=11 // pred_check_branch
          %391 = sbr.rel (%p389) target = $region24
        $region23: #{tpu_custom_call.1} parent=11 // pred_region
          %s393 = ssub.s32 256, 256
          %394 = vsyncadd [#allocation14], %s393
          %s395 = sshll.u32 [#allocation13], 4
          %s396 = int_to_ptr.vmem [resolvable:$true] %s395
          %401 = dma.hbm_to_vmem [thread:$0]  %s5, 256, %s396, [#allocation14], 64, 64, 4
        $region24: #{tpu_custom_call.1} parent=11 // pred_fallthru
          _
        // Predicated region
        $region25: #{tpu_custom_call.1} parent=11 // pred_check
          %p402 = pneg %p210
        $region26: #{tpu_custom_call.1} parent=11 // pred_check_branch
          %404 = sbr.rel (%p402) target = $region28
        $region27: #{tpu_custom_call.1} parent=11 // pred_region
          %s406 = ssub.s32 16, 16
          %407 = vsyncadd [#allocation14], %s406
          %s409 = sshll.u32 [#allocation15], 4
          %s410 = int_to_ptr.vmem [resolvable:$true] %s409
          %412 = dma.hbm_to_vmem [thread:$0]  %s6, 16, %s410, [#allocation14]
        $region28: #{tpu_custom_call.1} parent=11 // pred_fallthru
          _
        // Predicated region
        $region29: #{tpu_custom_call.1} parent=11 // pred_check
          %p413 = pneg %p231
        $region30: #{tpu_custom_call.1} parent=11 // pred_check_branch
          %415 = sbr.rel (%p413) target = $region32
        $region31: #{tpu_custom_call.1} parent=11 // pred_region
          %s417 = ssub.s32 256, 256
          %418 = vsyncadd [#allocation17], %s417
          %s419 = sshll.u32 [#allocation16], 4
          %s420 = int_to_ptr.vmem [resolvable:$true] %s419
          %425 = dma.hbm_to_vmem [thread:$0]  %s7, 256, %s420, [#allocation17], 64, 64, 4
        $region32: #{tpu_custom_call.1} parent=11 // pred_fallthru
          _
        // Predicated region
        $region33: #{tpu_custom_call.1} parent=11 // pred_check
          %p426 = pneg %p252
        $region34: #{tpu_custom_call.1} parent=11 // pred_check_branch
          %428 = sbr.rel (%p426) target = $region36
        $region35: #{tpu_custom_call.1} parent=11 // pred_region
          %s430 = ssub.s32 16, 16
          %431 = vsyncadd [#allocation17], %s430
          %s433 = sshll.u32 [#allocation18], 4
          %s434 = int_to_ptr.vmem [resolvable:$true] %s433
          %436 = dma.hbm_to_vmem [thread:$0]  %s8, 16, %s434, [#allocation17]
        $region36: #{tpu_custom_call.1} parent=11 // pred_fallthru
          _
        // Predicated region
        $region37: #{tpu_custom_call.1} parent=11 // pred_check
          %p437 = pneg %p273
        $region38: #{tpu_custom_call.1} parent=11 // pred_check_branch
          %439 = sbr.rel (%p437) target = $region40
        $region39: #{tpu_custom_call.1} parent=11 // pred_region
          _
        $region40: #{tpu_custom_call.1} parent=11 // pred_fallthru
          _
        // Predicated region
        $region41: #{tpu_custom_call.1} parent=11 // pred_check
          %p440 = pneg %p294
        $region42: #{tpu_custom_call.1} parent=11 // pred_check_branch
          %442 = sbr.rel (%p440) target = $region44
        $region43: #{tpu_custom_call.1} parent=11 // pred_region
          _
        $region44: #{tpu_custom_call.1} parent=11 // pred_fallthru
          _
      $region12: #{tpu_custom_call.1} parent=5 // pred_fallthru
        _
      %p443 = scmp.lt.s32.totalorder %s34, 2
      // Predicated region
      $region45: #{tpu_custom_call.1} parent=5 // pred_check
        %p444 = pneg %p443
      $region46: #{tpu_custom_call.1} parent=5 // pred_check_branch
        %446 = sbr.rel (%p444) target = $region48
      $region47: #{tpu_custom_call.1} parent=5 // pred_region
        // Predicated region
        $region49: #{tpu_custom_call.1} parent=47 // pred_check
          %p447 = pneg %p68
        $region50: #{tpu_custom_call.1} parent=47 // pred_check_branch
          %449 = sbr.rel (%p447) target = $region52
        $region51: #{tpu_custom_call.1} parent=47 // pred_region
          %s450 = sand.u32 %s58, 1
          %s451 = scalar_lea.sflag [#allocation5], %s450
          %s452 = sand.u32 %s58, 1
          %s453 = smul.addr %s452, 4
          %s454 = scalar_lea.vmem [#allocation4], %s453
          %s456 = ssub.s32 64, 64
          %457 = vsyncadd %s451, %s456
          %s458 = sadd.s32 %s42, %s41
          %s459 = smul.addr %s458, 64
          %s460 = scalar_lea.hbm %s0, %s459
          %s462 = sshll.u32 %s454, 4
          %s463 = int_to_ptr.vmem [resolvable:$true] %s462
          %465 = dma.hbm_to_vmem [thread:$0]  %s460, 64, %s463, %s451
        $region52: #{tpu_custom_call.1} parent=47 // pred_fallthru
          _
        // Predicated region
        $region53: #{tpu_custom_call.1} parent=47 // pred_check
          %p466 = pneg %p94
        $region54: #{tpu_custom_call.1} parent=47 // pred_check_branch
          %468 = sbr.rel (%p466) target = $region56
        $region55: #{tpu_custom_call.1} parent=47 // pred_region
          %s469 = sand.u32 %s34, 1
          %s470 = scalar_lea.sflag [#allocation8], %s469
          %s471 = sand.u32 %s84, 1
          %s472 = smul.addr %s471, 4
          %s473 = scalar_lea.vmem [#allocation7], %s472
          %s475 = ssub.s32 64, 64
          %476 = vsyncadd %s470, %s475
          %s477 = smul.addr %s41, 64
          %s478 = scalar_lea.hbm %s1, %s477
          %s480 = sshll.u32 %s473, 4
          %s481 = int_to_ptr.vmem [resolvable:$true] %s480
          %483 = dma.hbm_to_vmem [thread:$0]  %s478, 64, %s481, %s470
        $region56: #{tpu_custom_call.1} parent=47 // pred_fallthru
          _
        // Predicated region
        $region57: #{tpu_custom_call.1} parent=47 // pred_check
          %p484 = pneg %p120
        $region58: #{tpu_custom_call.1} parent=47 // pred_check_branch
          %486 = sbr.rel (%p484) target = $region60
        $region59: #{tpu_custom_call.1} parent=47 // pred_region
          %s487 = sand.u32 %s34, 1
          %s488 = scalar_lea.sflag [#allocation8], %s487
          %s489 = sand.u32 %s110, 1
          %s490 = smul.addr %s489, 4
          %s491 = scalar_lea.vmem [#allocation9], %s490
          %s493 = ssub.s32 64, 64
          %494 = vsyncadd %s488, %s493
          %s495 = smul.addr %s41, 64
          %s496 = scalar_lea.hbm %s2, %s495
          %s498 = sshll.u32 %s491, 4
          %s499 = int_to_ptr.vmem [resolvable:$true] %s498
          %501 = dma.hbm_to_vmem [thread:$0]  %s496, 64, %s499, %s488
        $region60: #{tpu_custom_call.1} parent=47 // pred_fallthru
          _
      $region48: #{tpu_custom_call.1} parent=5 // pred_fallthru
        _
      %p502 = scmp.le.s32.totalorder 1, %s34
      %p503 = scmp.lt.s32.totalorder %s34, 3
      %p504 = pnand %p502, %p503
      %p505 = pneg %p504
      // Predicated region
      $region61: #{tpu_custom_call.1} parent=5 // pred_check
        _
      $region62: #{tpu_custom_call.1} parent=5 // pred_check_branch
        %507 = sbr.rel (%p504) target = $region64
      $region63: #{tpu_custom_call.1} parent=5 // pred_region
        %s508 = ssub.s32 %s34, 1
        %s509 = sand.u32 %s61, 1
        %s510 = scalar_lea.sflag [#allocation5], %s509
        %s511 = sand.u32 %s61, 1
        %s512 = smul.addr %s511, 4
        %s513 = scalar_lea.vmem [#allocation4], %s512
        // Predicated region
        $region65: #{tpu_custom_call.1} parent=63 // pred_check
          %p514 = pneg %p74
        $region66: #{tpu_custom_call.1} parent=63 // pred_check_branch
          %516 = sbr.rel (%p514) target = $region68
        $region67: #{tpu_custom_call.1} parent=63 // pred_region
          %517 = dma.done %s510, 64
        $region68: #{tpu_custom_call.1} parent=63 // pred_fallthru
          _
        %s518 = sand.u32 %s39, 1
        %s519 = scalar_lea.sflag [#allocation8], %s518
        %s520 = sand.u32 %s87, 1
        %s521 = smul.addr %s520, 4
        %s522 = scalar_lea.vmem [#allocation7], %s521
        // Predicated region
        $region69: #{tpu_custom_call.1} parent=63 // pred_check
          %p523 = pneg %p100
        $region70: #{tpu_custom_call.1} parent=63 // pred_check_branch
          %525 = sbr.rel (%p523) target = $region72
        $region71: #{tpu_custom_call.1} parent=63 // pred_region
          %526 = dma.done %s519, 64
        $region72: #{tpu_custom_call.1} parent=63 // pred_fallthru
          _
        %s527 = sand.u32 %s39, 1
        %s528 = scalar_lea.sflag [#allocation8], %s527
        %s529 = sand.u32 %s113, 1
        %s530 = smul.addr %s529, 4
        %s531 = scalar_lea.vmem [#allocation9], %s530
        // Predicated region
        $region73: #{tpu_custom_call.1} parent=63 // pred_check
          %p532 = pneg %p126
        $region74: #{tpu_custom_call.1} parent=63 // pred_check_branch
          %534 = sbr.rel (%p532) target = $region76
        $region75: #{tpu_custom_call.1} parent=63 // pred_region
          %535 = dma.done %s528, 64
        $region76: #{tpu_custom_call.1} parent=63 // pred_fallthru
          _
        // Predicated region
        $region77: #{tpu_custom_call.1} parent=63 // pred_check
          %p536 = pneg %p147
        $region78: #{tpu_custom_call.1} parent=63 // pred_check_branch
          %538 = sbr.rel (%p536) target = $region80
        $region79: #{tpu_custom_call.1} parent=63 // pred_region
          %539 = dma.done [#allocation11], 256
        $region80: #{tpu_custom_call.1} parent=63 // pred_fallthru
          _
        // Predicated region
        $region81: #{tpu_custom_call.1} parent=63 // pred_check
          %p540 = pneg %p168
        $region82: #{tpu_custom_call.1} parent=63 // pred_check_branch
          %542 = sbr.rel (%p540) target = $region84
        $region83: #{tpu_custom_call.1} parent=63 // pred_region
          %543 = dma.done [#allocation11], 16
        $region84: #{tpu_custom_call.1} parent=63 // pred_fallthru
          _
        // Predicated region
        $region85: #{tpu_custom_call.1} parent=63 // pred_check
          %p544 = pneg %p189
        $region86: #{tpu_custom_call.1} parent=63 // pred_check_branch
          %546 = sbr.rel (%p544) target = $region88
        $region87: #{tpu_custom_call.1} parent=63 // pred_region
          %547 = dma.done [#allocation14], 256
        $region88: #{tpu_custom_call.1} parent=63 // pred_fallthru
          _
        // Predicated region
        $region89: #{tpu_custom_call.1} parent=63 // pred_check
          %p548 = pneg %p210
        $region90: #{tpu_custom_call.1} parent=63 // pred_check_branch
          %550 = sbr.rel (%p548) target = $region92
        $region91: #{tpu_custom_call.1} parent=63 // pred_region
          %551 = dma.done [#allocation14], 16
        $region92: #{tpu_custom_call.1} parent=63 // pred_fallthru
          _
        // Predicated region
        $region93: #{tpu_custom_call.1} parent=63 // pred_check
          %p552 = pneg %p231
        $region94: #{tpu_custom_call.1} parent=63 // pred_check_branch
          %554 = sbr.rel (%p552) target = $region96
        $region95: #{tpu_custom_call.1} parent=63 // pred_region
          %555 = dma.done [#allocation17], 256
        $region96: #{tpu_custom_call.1} parent=63 // pred_fallthru
          _
        // Predicated region
        $region97: #{tpu_custom_call.1} parent=63 // pred_check
          %p556 = pneg %p252
        $region98: #{tpu_custom_call.1} parent=63 // pred_check_branch
          %558 = sbr.rel (%p556) target = $region100
        $region99: #{tpu_custom_call.1} parent=63 // pred_region
          %559 = dma.done [#allocation17], 16
        $region100: #{tpu_custom_call.1} parent=63 // pred_fallthru
          _
        %s560 = sand.u32 %s61, 1
        %s561 = scalar_lea.sflag [#allocation5], %s560
        %s562 = sand.u32 %s61, 1
        %s563 = smul.addr %s562, 4
        %s564 = scalar_lea.vmem [#allocation4], %s563
        %p565 = pneg %p74
        %p566 = pneg %p71
        %s567 = sand.u32 %s39, 1
        %s568 = scalar_lea.sflag [#allocation8], %s567
        %s569 = sand.u32 %s87, 1
        %s570 = smul.addr %s569, 4
        %s571 = scalar_lea.vmem [#allocation7], %s570
        %p572 = pneg %p100
        %p573 = pneg %p97
        %s574 = sand.u32 %s39, 1
        %s575 = scalar_lea.sflag [#allocation8], %s574
        %s576 = sand.u32 %s113, 1
        %s577 = smul.addr %s576, 4
        %s578 = scalar_lea.vmem [#allocation9], %s577
        %p579 = pneg %p126
        %p580 = pneg %p123
        %p581 = pneg %p147
        %p582 = pneg %p144
        %p583 = pneg %p168
        %p584 = pneg %p165
        %p585 = pneg %p189
        %p586 = pneg %p186
        %p587 = pneg %p210
        %p588 = pneg %p207
        %p589 = pneg %p231
        %p590 = pneg %p228
        %p591 = pneg %p252
        %p592 = pneg %p249
        %p593 = pneg %p273
        %p594 = pneg %p270
        %p595 = pneg %p294
        %p596 = pneg %p291
        %p597 = pneg %p322
        %p598 = pneg %p319
        %s599 = sand.u32 %s309, 1
        %s600 = scalar_lea.sflag [#allocation6], %s599
        %s601 = sand.u32 %s309, 1
        %s602 = smul.addr %s601, 8
        %s603 = scalar_lea.vmem [#allocation19], %s602
        %p604 = pneg %p350
        %p605 = pneg %p347
        %s606 = sand.u32 %s337, 1
        %s607 = scalar_lea.sflag [#allocation21], %s606
        %s608 = sand.u32 %s337, 1
        %s609 = smul.addr %s608, 16
        %s610 = scalar_lea.vmem [#allocation20], %s609
        %p612 = scmp.eq.s32.totalorder %s44, 0
        // Predicated region
        $region101: #{tpu_custom_call.1} parent=63 // pred_check
          %p613 = pneg %p612
        $region102: #{tpu_custom_call.1} parent=63 // pred_check_branch
          %615 = sbr.rel (%p613) target = $region104
        $region103: #{tpu_custom_call.1} parent=63 // pred_region
          %v616 = vld [vmem:[%s522] sm:$0xf]
          %v617 = vld [vmem:[%s531] sm:$0xf]
          %v618 = vld [vmem:[#allocation13] sm:$0xf]
          %v619 = vld [vmem:[#allocation13 + $0x4] sm:$0xf]
          %v620 = vld [vmem:[#allocation13 + $0x8] sm:$0xf]
          %v621 = vld [vmem:[#allocation13 + $0xc] sm:$0xf]
          %v622 = vld [vmem:[#allocation15] sm:$0x1]
          %v624 = vlaneseq
          %v625 = vshrl.u32 %v624, 7
          %v626 = vsub.s32 0, %v625
          %v627 = vrot.slane %v622, %v626
          %v633 = vunpack.c.l.b16 %v618
          %v634 = vunpack.c.l.b16 %v619
          %v635 = vunpack.c.l.b16 %v620
          %v636 = vunpack.c.l.b16 %v621
          %v637 = vpack.c.b16 %v634, %v633
          %v638 = vpack.c.b16 %v636, %v635
          %vm641 = vcmask 261120
          %v643 = vsel %vm641, %v616, 0
          %645 = vmatprep.subr.bf16.mxu0 0
          %646 = vmatpush1.bf16.msra.mxu0 0
          %647 = vmatprep.subr.bf16.mxu0 0
          %648 = vmatpush1.bf16.msra.mxu0 0
          %649 = vmatprep.subr.bf16.mxu0 0
          %650 = vmatpush1.bf16.msra.mxu0 0
          %651 = vmatprep.subr.bf16.mxu0 0
          %652 = vmatpush1.bf16.msra.mxu0 0
          %653 = vmatprep.subr.bf16.mxu0 0
          %654 = vmatpush1.bf16.msra.mxu0 0
          %655 = vmatprep.subr.bf16.mxu0 0
          %656 = vmatpush1.bf16.msra.mxu0 0
          %657 = vmatprep.subr.bf16.mxu0 0
          %658 = vmatpush1.bf16.msra.mxu0 %v638
          %659 = vmatprep.subr.bf16.mxu0 0
          %660 = vmatpush1.bf16.msra.mxu0 %v637
          %661 = vmatprep.subr.bf16.mxu0 0
          %662 = vmatpush2.bf16.msra.mxu0 0
          %663 = vmatprep.subr.bf16.mxu0 0
          %664 = vmatpush2.bf16.msra.mxu0 0
          %665 = vmatprep.subr.bf16.mxu0 0
          %666 = vmatpush2.bf16.msra.mxu0 0
          %667 = vmatprep.subr.bf16.mxu0 0
          %668 = vmatpush2.bf16.msra.mxu0 0
          %669 = vmatprep.subr.bf16.mxu0 0
          %670 = vmatpush2.bf16.msra.mxu0 0
          %671 = vmatprep.subr.bf16.mxu0 0
          %672 = vmatpush2.bf16.msra.mxu0 0
          %673 = vmatprep.subr.bf16.mxu0 0
          %674 = vmatpush2.bf16.msra.mxu0 0
          %675 = vmatprep.subr.bf16.mxu0 0
          %676 = vmatpush2.bf16.msra.mxu0 0
          %677 = vmatprep.mubr.bf16.mxu0 0
          %678 = vmatmul.mubr.bf16.gmra.mxu0 %v643
          %v679 = vpop.f32.mrf.mxu0
          %v680 = vadd.f32 %v627, %v679
          %v681 = vpop.f32.mrf.mxu0
          %v682 = vpop.f32.mrf.mxu0
          %v683 = vpop.f32.mrf.mxu0
          %684 = vdwg.mxu0
          %v685 = vpack.c.bf16 %v680, %v680
          %vm686 = vcmask 257024
          %687 = vst.msk [vmem:[#allocation2] sm:$0xf] %vm686, %v685
          %v688 = vld [vmem:[#allocation16] sm:$0xf]
          %v689 = vld [vmem:[#allocation16 + $0x4] sm:$0xf]
          %v690 = vld [vmem:[#allocation16 + $0x8] sm:$0xf]
          %v691 = vld [vmem:[#allocation16 + $0xc] sm:$0xf]
          %v692 = vld [vmem:[#allocation18] sm:$0x1]
          %v694 = vlaneseq
          %v695 = vshrl.u32 %v694, 7
          %v696 = vsub.s32 0, %v695
          %v697 = vrot.slane %v692, %v696
          %v703 = vunpack.c.l.b16 %v688
          %v704 = vunpack.c.l.b16 %v689
          %v705 = vunpack.c.l.b16 %v690
          %v706 = vunpack.c.l.b16 %v691
          %v707 = vpack.c.b16 %v704, %v703
          %v708 = vpack.c.b16 %v706, %v705
          %v712 = vsel %vm641, %v617, 0
          %714 = vmatprep.subr.bf16.mxu0 0
          %715 = vmatpush1.bf16.msra.mxu0 0
          %716 = vmatprep.subr.bf16.mxu0 0
          %717 = vmatpush1.bf16.msra.mxu0 0
          %718 = vmatprep.subr.bf16.mxu0 0
          %719 = vmatpush1.bf16.msra.mxu0 0
          %720 = vmatprep.subr.bf16.mxu0 0
          %721 = vmatpush1.bf16.msra.mxu0 0
          %722 = vmatprep.subr.bf16.mxu0 0
          %723 = vmatpush1.bf16.msra.mxu0 0
          %724 = vmatprep.subr.bf16.mxu0 0
          %725 = vmatpush1.bf16.msra.mxu0 0
          %726 = vmatprep.subr.bf16.mxu0 0
          %727 = vmatpush1.bf16.msra.mxu0 %v708
          %728 = vmatprep.subr.bf16.mxu0 0
          %729 = vmatpush1.bf16.msra.mxu0 %v707
          %730 = vmatprep.subr.bf16.mxu0 0
          %731 = vmatpush2.bf16.msra.mxu0 0
          %732 = vmatprep.subr.bf16.mxu0 0
          %733 = vmatpush2.bf16.msra.mxu0 0
          %734 = vmatprep.subr.bf16.mxu0 0
          %735 = vmatpush2.bf16.msra.mxu0 0
          %736 = vmatprep.subr.bf16.mxu0 0
          %737 = vmatpush2.bf16.msra.mxu0 0
          %738 = vmatprep.subr.bf16.mxu0 0
          %739 = vmatpush2.bf16.msra.mxu0 0
          %740 = vmatprep.subr.bf16.mxu0 0
          %741 = vmatpush2.bf16.msra.mxu0 0
          %742 = vmatprep.subr.bf16.mxu0 0
          %743 = vmatpush2.bf16.msra.mxu0 0
          %744 = vmatprep.subr.bf16.mxu0 0
          %745 = vmatpush2.bf16.msra.mxu0 0
          %746 = vmatprep.mubr.bf16.mxu0 0
          %747 = vmatmul.mubr.bf16.gmra.mxu0 %v712
          %v748 = vpop.f32.mrf.mxu0
          %v749 = vadd.f32 %v697, %v748
          %v750 = vpop.f32.mrf.mxu0
          %v751 = vpop.f32.mrf.mxu0
          %v752 = vpop.f32.mrf.mxu0
          %753 = vdwg.mxu0
          %v754 = vpack.c.bf16 %v749, %v749
          %755 = vst.msk [vmem:[#allocation3] sm:$0xf] %vm686, %v754
        $region104: #{tpu_custom_call.1} parent=63 // pred_fallthru
          _
        %v756 = vld [vmem:[%s513] sm:$0xf]
        %v757 = vld [vmem:[#allocation10] sm:$0xf]
        %v758 = vld [vmem:[#allocation10 + $0x4] sm:$0xf]
        %v759 = vld [vmem:[#allocation10 + $0x8] sm:$0xf]
        %v760 = vld [vmem:[#allocation10 + $0xc] sm:$0xf]
        %v761 = vld [vmem:[#allocation12] sm:$0x1]
        %v763 = vlaneseq
        %v764 = vshrl.u32 %v763, 7
        %v765 = vsub.s32 0, %v764
        %v766 = vrot.slane %v761, %v765
        %v772 = vunpack.c.l.b16 %v757
        %v773 = vunpack.c.l.b16 %v758
        %v774 = vunpack.c.l.b16 %v759
        %v775 = vunpack.c.l.b16 %v760
        %v776 = vpack.c.b16 %v773, %v772
        %v777 = vpack.c.b16 %v775, %v774
        %vm780 = vcmask 261120
        %v782 = vsel %vm780, %v756, 0
        %784 = vmatprep.subr.bf16.mxu0 0
        %785 = vmatpush1.bf16.msra.mxu0 0
        %786 = vmatprep.subr.bf16.mxu0 0
        %787 = vmatpush1.bf16.msra.mxu0 0
        %788 = vmatprep.subr.bf16.mxu0 0
        %789 = vmatpush1.bf16.msra.mxu0 0
        %790 = vmatprep.subr.bf16.mxu0 0
        %791 = vmatpush1.bf16.msra.mxu0 0
        %792 = vmatprep.subr.bf16.mxu0 0
        %793 = vmatpush1.bf16.msra.mxu0 0
        %794 = vmatprep.subr.bf16.mxu0 0
        %795 = vmatpush1.bf16.msra.mxu0 0
        %796 = vmatprep.subr.bf16.mxu0 0
        %797 = vmatpush1.bf16.msra.mxu0 %v777
        %798 = vmatprep.subr.bf16.mxu0 0
        %799 = vmatpush1.bf16.msra.mxu0 %v776
        %800 = vmatprep.subr.bf16.mxu0 0
        %801 = vmatpush2.bf16.msra.mxu0 0
        %802 = vmatprep.subr.bf16.mxu0 0
        %803 = vmatpush2.bf16.msra.mxu0 0
        %804 = vmatprep.subr.bf16.mxu0 0
        %805 = vmatpush2.bf16.msra.mxu0 0
        %806 = vmatprep.subr.bf16.mxu0 0
        %807 = vmatpush2.bf16.msra.mxu0 0
        %808 = vmatprep.subr.bf16.mxu0 0
        %809 = vmatpush2.bf16.msra.mxu0 0
        %810 = vmatprep.subr.bf16.mxu0 0
        %811 = vmatpush2.bf16.msra.mxu0 0
        %812 = vmatprep.subr.bf16.mxu0 0
        %813 = vmatpush2.bf16.msra.mxu0 0
        %814 = vmatprep.subr.bf16.mxu0 0
        %815 = vmatpush2.bf16.msra.mxu0 0
        %816 = vmatprep.mubr.bf16.mxu0 0
        %817 = vmatmul.mubr.bf16.gmra.mxu0 %v782
        %v818 = vpop.f32.mrf.mxu0
        %v819 = vadd.f32 %v766, %v818
        %v820 = vpop.f32.mrf.mxu0
        %v821 = vpop.f32.mrf.mxu0
        %v822 = vpop.f32.mrf.mxu0
        %823 = vdwg.mxu0
        %v824 = vpack.c.bf16 %v819, %v819
        %v825 = vld [vmem:[#allocation2] sm:$0xf]
        %v826 = vld [vmem:[#allocation3] sm:$0xf]
        %vm827 = vcmask 64512
        %v829 = vsel %vm827, %v824, 0
        %v832 = vsel %vm827, %v825, 0
        %834 = vmatprep.subr.bf16.mxu0 0
        %835 = vmatpush1.bf16.xpose.msra.mxu0 0
        %836 = vmatprep.subr.bf16.mxu0 0
        %837 = vmatpush1.bf16.xpose.msra.mxu0 0
        %838 = vmatprep.subr.bf16.mxu0 0
        %839 = vmatpush1.bf16.xpose.msra.mxu0 0
        %840 = vmatprep.subr.bf16.mxu0 0
        %841 = vmatpush1.bf16.xpose.msra.mxu0 0
        %842 = vmatprep.subr.bf16.mxu0 0
        %843 = vmatpush1.bf16.xpose.msra.mxu0 0
        %844 = vmatprep.subr.bf16.mxu0 0
        %845 = vmatpush1.bf16.xpose.msra.mxu0 0
        %846 = vmatprep.subr.bf16.mxu0 0
        %847 = vmatpush1.bf16.xpose.msra.mxu0 0
        %848 = vmatprep.subr.bf16.mxu0 0
        %849 = vmatpush1.bf16.xpose.msra.mxu0 %v832
        %850 = vmatprep.subr.bf16.mxu0 0
        %851 = vmatpush2.bf16.xpose.msra.mxu0 0
        %852 = vmatprep.subr.bf16.mxu0 0
        %853 = vmatpush2.bf16.xpose.msra.mxu0 0
        %854 = vmatprep.subr.bf16.mxu0 0
        %855 = vmatpush2.bf16.xpose.msra.mxu0 0
        %856 = vmatprep.subr.bf16.mxu0 0
        %857 = vmatpush2.bf16.xpose.msra.mxu0 0
        %858 = vmatprep.subr.bf16.mxu0 0
        %859 = vmatpush2.bf16.xpose.msra.mxu0 0
        %860 = vmatprep.subr.bf16.mxu0 0
        %861 = vmatpush2.bf16.xpose.msra.mxu0 0
        %862 = vmatprep.subr.bf16.mxu0 0
        %863 = vmatpush2.bf16.xpose.msra.mxu0 0
        %864 = vmatprep.subr.bf16.mxu0 0
        %865 = vmatpush2.bf16.xpose.msra.mxu0 0
        %866 = vmatprep.mubr.bf16.mxu0 0
        %867 = vmatmul.mubr.bf16.gmra.mxu0 %v829
        %v868 = vpop.f32.mrf.mxu0
        %v869 = vadd.f32 0.0, %v868
        %v870 = vpop.f32.mrf.mxu0
        %v871 = vpop.f32.mrf.mxu0
        %v872 = vpop.f32.mrf.mxu0
        %873 = vdwg.mxu0
        %v874 = vsel %vm827, %v869, -inf
        %875 = vmax.xlane.f32.xlu0 %v874
        %v876 = vpop.xlane.xlu0 %875
        %v877 = vsub.f32 %v869, %v876
        %v878 = vmul.f32 %v877, 1.442695
        %v879 = vpow.pop %v878
        %v880 = vsel %vm827, %v879, 0.0
        %881 = vadd.xlane.f32.xlu0 %v880
        %v882 = vpop.xlane.xlu0 %881
        %v883 = vrcp.pop %v882
        %v884 = vmul.f32 %v879, %v883
        %v885 = vpack.c.bf16 %v884, %v884
        %vm886 = vcmask 60416
        %887 = vst.msk [vmem:[%s610] sm:$0xf] %vm886, %v885
        %v889 = vsel %vm827, %v885, 0
        %vm891 = vcmask 1043456
        %v893 = vsel %vm891, %v826, 0
        %895 = vmatprep.subr.bf16.mxu0 0
        %896 = vmatpush1.bf16.msra.mxu0 0
        %897 = vmatprep.subr.bf16.mxu0 0
        %898 = vmatpush1.bf16.msra.mxu0 0
        %899 = vmatprep.subr.bf16.mxu0 0
        %900 = vmatpush1.bf16.msra.mxu0 0
        %901 = vmatprep.subr.bf16.mxu0 0
        %902 = vmatpush1.bf16.msra.mxu0 0
        %903 = vmatprep.subr.bf16.mxu0 0
        %904 = vmatpush1.bf16.msra.mxu0 0
        %905 = vmatprep.subr.bf16.mxu0 0
        %906 = vmatpush1.bf16.msra.mxu0 0
        %907 = vmatprep.subr.bf16.mxu0 0
        %908 = vmatpush1.bf16.msra.mxu0 0
        %909 = vmatprep.subr.bf16.mxu0 0
        %910 = vmatpush1.bf16.msra.mxu0 %v893
        %911 = vmatprep.subr.bf16.mxu0 0
        %912 = vmatpush2.bf16.msra.mxu0 0
        %913 = vmatprep.subr.bf16.mxu0 0
        %914 = vmatpush2.bf16.msra.mxu0 0
        %915 = vmatprep.subr.bf16.mxu0 0
        %916 = vmatpush2.bf16.msra.mxu0 0
        %917 = vmatprep.subr.bf16.mxu0 0
        %918 = vmatpush2.bf16.msra.mxu0 0
        %919 = vmatprep.subr.bf16.mxu0 0
        %920 = vmatpush2.bf16.msra.mxu0 0
        %921 = vmatprep.subr.bf16.mxu0 0
        %922 = vmatpush2.bf16.msra.mxu0 0
        %923 = vmatprep.subr.bf16.mxu0 0
        %924 = vmatpush2.bf16.msra.mxu0 0
        %925 = vmatprep.subr.bf16.mxu0 0
        %926 = vmatpush2.bf16.msra.mxu0 0
        %927 = vmatprep.mubr.bf16.mxu0 0
        %928 = vmatmul.mubr.bf16.gmra.mxu0 %v889
        %v929 = vpop.f32.mrf.mxu0
        %v930 = vadd.f32 0.0, %v929
        %v931 = vpop.f32.mrf.mxu0
        %v932 = vpop.f32.mrf.mxu0
        %v933 = vpop.f32.mrf.mxu0
        %934 = vdwg.mxu0
        %v935 = vpack.c.bf16 %v930, %v930
        %937 = vrot.lane.b32.xlu0 %v824, 120
        %v938 = vpop.permute.xlu0 %937
        %v940 = vunpack.c.l.b16 %v825
        %v941 = vpack.c.b16 %v940, %v940
        %942 = vrot.lane.b32.xlu0 %v941, 120
        %v943 = vpop.permute.xlu0 %942
        %v945 = vsel %vm827, %v938, 0
        %v948 = vsel %vm827, %v943, 0
        %950 = vmatprep.subr.bf16.mxu0 0
        %951 = vmatpush1.bf16.xpose.msra.mxu0 0
        %952 = vmatprep.subr.bf16.mxu0 0
        %953 = vmatpush1.bf16.xpose.msra.mxu0 0
        %954 = vmatprep.subr.bf16.mxu0 0
        %955 = vmatpush1.bf16.xpose.msra.mxu0 0
        %956 = vmatprep.subr.bf16.mxu0 0
        %957 = vmatpush1.bf16.xpose.msra.mxu0 0
        %958 = vmatprep.subr.bf16.mxu0 0
        %959 = vmatpush1.bf16.xpose.msra.mxu0 0
        %960 = vmatprep.subr.bf16.mxu0 0
        %961 = vmatpush1.bf16.xpose.msra.mxu0 0
        %962 = vmatprep.subr.bf16.mxu0 0
        %963 = vmatpush1.bf16.xpose.msra.mxu0 0
        %964 = vmatprep.subr.bf16.mxu0 0
        %965 = vmatpush1.bf16.xpose.msra.mxu0 %v948
        %966 = vmatprep.subr.bf16.mxu0 0
        %967 = vmatpush2.bf16.xpose.msra.mxu0 0
        %968 = vmatprep.subr.bf16.mxu0 0
        %969 = vmatpush2.bf16.xpose.msra.mxu0 0
        %970 = vmatprep.subr.bf16.mxu0 0
        %971 = vmatpush2.bf16.xpose.msra.mxu0 0
        %972 = vmatprep.subr.bf16.mxu0 0
        %973 = vmatpush2.bf16.xpose.msra.mxu0 0
        %974 = vmatprep.subr.bf16.mxu0 0
        %975 = vmatpush2.bf16.xpose.msra.mxu0 0
        %976 = vmatprep.subr.bf16.mxu0 0
        %977 = vmatpush2.bf16.xpose.msra.mxu0 0
        %978 = vmatprep.subr.bf16.mxu0 0
        %979 = vmatpush2.bf16.xpose.msra.mxu0 0
        %980 = vmatprep.subr.bf16.mxu0 0
        %981 = vmatpush2.bf16.xpose.msra.mxu0 0
        %982 = vmatprep.mubr.bf16.mxu0 0
        %983 = vmatmul.mubr.bf16.gmra.mxu0 %v945
        %v984 = vpop.f32.mrf.mxu0
        %v985 = vadd.f32 0.0, %v984
        %v986 = vpop.f32.mrf.mxu0
        %v987 = vpop.f32.mrf.mxu0
        %v988 = vpop.f32.mrf.mxu0
        %989 = vdwg.mxu0
        %v990 = vsel %vm827, %v985, -inf
        %991 = vmax.xlane.f32.xlu0 %v990
        %v992 = vpop.xlane.xlu0 %991
        %v993 = vsub.f32 %v985, %v992
        %v994 = vmul.f32 %v993, 1.442695
        %v995 = vpow.pop %v994
        %v996 = vsel %vm827, %v995, 0.0
        %997 = vadd.xlane.f32.xlu0 %v996
        %v998 = vpop.xlane.xlu0 %997
        %v999 = vrcp.pop %v998
        %v1000 = vmul.f32 %v995, %v999
        %v1001 = vpack.c.bf16 %v1000, %v1000
        %s1002 = scalar_lea.vmem %s610, 4 [#allocation20]
        %1003 = vst.msk [vmem:[%s1002] sm:$0xf] %vm886, %v1001
        %v1005 = vunpack.c.l.b16 %v826
        %v1006 = vpack.c.b16 %v1005, %v1005
        %1007 = vrot.lane.b32.xlu0 %v1006, 120
        %v1008 = vpop.permute.xlu0 %1007
        %v1010 = vsel %vm827, %v1001, 0
        %v1013 = vsel %vm891, %v1008, 0
        %1015 = vmatprep.subr.bf16.mxu0 0
        %1016 = vmatpush1.bf16.msra.mxu0 0
        %1017 = vmatprep.subr.bf16.mxu0 0
        %1018 = vmatpush1.bf16.msra.mxu0 0
        %1019 = vmatprep.subr.bf16.mxu0 0
        %1020 = vmatpush1.bf16.msra.mxu0 0
        %1021 = vmatprep.subr.bf16.mxu0 0
        %1022 = vmatpush1.bf16.msra.mxu0 0
        %1023 = vmatprep.subr.bf16.mxu0 0
        %1024 = vmatpush1.bf16.msra.mxu0 0
        %1025 = vmatprep.subr.bf16.mxu0 0
        %1026 = vmatpush1.bf16.msra.mxu0 0
        %1027 = vmatprep.subr.bf16.mxu0 0
        %1028 = vmatpush1.bf16.msra.mxu0 0
        %1029 = vmatprep.subr.bf16.mxu0 0
        %1030 = vmatpush1.bf16.msra.mxu0 %v1013
        %1031 = vmatprep.subr.bf16.mxu0 0
        %1032 = vmatpush2.bf16.msra.mxu0 0
        %1033 = vmatprep.subr.bf16.mxu0 0
        %1034 = vmatpush2.bf16.msra.mxu0 0
        %1035 = vmatprep.subr.bf16.mxu0 0
        %1036 = vmatpush2.bf16.msra.mxu0 0
        %1037 = vmatprep.subr.bf16.mxu0 0
        %1038 = vmatpush2.bf16.msra.mxu0 0
        %1039 = vmatprep.subr.bf16.mxu0 0
        %1040 = vmatpush2.bf16.msra.mxu0 0
        %1041 = vmatprep.subr.bf16.mxu0 0
        %1042 = vmatpush2.bf16.msra.mxu0 0
        %1043 = vmatprep.subr.bf16.mxu0 0
        %1044 = vmatpush2.bf16.msra.mxu0 0
        %1045 = vmatprep.subr.bf16.mxu0 0
        %1046 = vmatpush2.bf16.msra.mxu0 0
        %1047 = vmatprep.mubr.bf16.mxu0 0
        %1048 = vmatmul.mubr.bf16.gmra.mxu0 %v1010
        %v1049 = vpop.f32.mrf.mxu0
        %v1050 = vadd.f32 0.0, %v1049
        %v1051 = vpop.f32.mrf.mxu0
        %v1052 = vpop.f32.mrf.mxu0
        %v1053 = vpop.f32.mrf.mxu0
        %1054 = vdwg.mxu0
        %v1055 = vpack.c.bf16 %v1050, %v1050
        %1056 = vrot.lane.b32.xlu0 %v824, 112
        %v1057 = vpop.permute.xlu0 %1056
        %1058 = vrot.lane.b32.xlu0 %v941, 112
        %v1059 = vpop.permute.xlu0 %1058
        %v1061 = vsel %vm827, %v1057, 0
        %v1064 = vsel %vm827, %v1059, 0
        %1066 = vmatprep.subr.bf16.mxu0 0
        %1067 = vmatpush1.bf16.xpose.msra.mxu0 0
        %1068 = vmatprep.subr.bf16.mxu0 0
        %1069 = vmatpush1.bf16.xpose.msra.mxu0 0
        %1070 = vmatprep.subr.bf16.mxu0 0
        %1071 = vmatpush1.bf16.xpose.msra.mxu0 0
        %1072 = vmatprep.subr.bf16.mxu0 0
        %1073 = vmatpush1.bf16.xpose.msra.mxu0 0
        %1074 = vmatprep.subr.bf16.mxu0 0
        %1075 = vmatpush1.bf16.xpose.msra.mxu0 0
        %1076 = vmatprep.subr.bf16.mxu0 0
        %1077 = vmatpush1.bf16.xpose.msra.mxu0 0
        %1078 = vmatprep.subr.bf16.mxu0 0
        %1079 = vmatpush1.bf16.xpose.msra.mxu0 0
        %1080 = vmatprep.subr.bf16.mxu0 0
        %1081 = vmatpush1.bf16.xpose.msra.mxu0 %v1064
        %1082 = vmatprep.subr.bf16.mxu0 0
        %1083 = vmatpush2.bf16.xpose.msra.mxu0 0
        %1084 = vmatprep.subr.bf16.mxu0 0
        %1085 = vmatpush2.bf16.xpose.msra.mxu0 0
        %1086 = vmatprep.subr.bf16.mxu0 0
        %1087 = vmatpush2.bf16.xpose.msra.mxu0 0
        %1088 = vmatprep.subr.bf16.mxu0 0
        %1089 = vmatpush2.bf16.xpose.msra.mxu0 0
        %1090 = vmatprep.subr.bf16.mxu0 0
        %1091 = vmatpush2.bf16.xpose.msra.mxu0 0
        %1092 = vmatprep.subr.bf16.mxu0 0
        %1093 = vmatpush2.bf16.xpose.msra.mxu0 0
        %1094 = vmatprep.subr.bf16.mxu0 0
        %1095 = vmatpush2.bf16.xpose.msra.mxu0 0
        %1096 = vmatprep.subr.bf16.mxu0 0
        %1097 = vmatpush2.bf16.xpose.msra.mxu0 0
        %1098 = vmatprep.mubr.bf16.mxu0 0
        %1099 = vmatmul.mubr.bf16.gmra.mxu0 %v1061
        %v1100 = vpop.f32.mrf.mxu0
        %v1101 = vadd.f32 0.0, %v1100
        %v1102 = vpop.f32.mrf.mxu0
        %v1103 = vpop.f32.mrf.mxu0
        %v1104 = vpop.f32.mrf.mxu0
        %1105 = vdwg.mxu0
        %v1106 = vsel %vm827, %v1101, -inf
        %1107 = vmax.xlane.f32.xlu0 %v1106
        %v1108 = vpop.xlane.xlu0 %1107
        %v1109 = vsub.f32 %v1101, %v1108
        %v1110 = vmul.f32 %v1109, 1.442695
        %v1111 = vpow.pop %v1110
        %v1112 = vsel %vm827, %v1111, 0.0
        %1113 = vadd.xlane.f32.xlu0 %v1112
        %v1114 = vpop.xlane.xlu0 %1113
        %v1115 = vrcp.pop %v1114
        %v1116 = vmul.f32 %v1111, %v1115
        %v1117 = vpack.c.bf16 %v1116, %v1116
        %s1118 = scalar_lea.vmem %s610, 8 [#allocation20]
        %1119 = vst.msk [vmem:[%s1118] sm:$0xf] %vm886, %v1117
        %1120 = vrot.lane.b32.xlu0 %v1006, 112
        %v1121 = vpop.permute.xlu0 %1120
        %v1123 = vsel %vm827, %v1117, 0
        %v1126 = vsel %vm891, %v1121, 0
        %1128 = vmatprep.subr.bf16.mxu0 0
        %1129 = vmatpush1.bf16.msra.mxu0 0
        %1130 = vmatprep.subr.bf16.mxu0 0
        %1131 = vmatpush1.bf16.msra.mxu0 0
        %1132 = vmatprep.subr.bf16.mxu0 0
        %1133 = vmatpush1.bf16.msra.mxu0 0
        %1134 = vmatprep.subr.bf16.mxu0 0
        %1135 = vmatpush1.bf16.msra.mxu0 0
        %1136 = vmatprep.subr.bf16.mxu0 0
        %1137 = vmatpush1.bf16.msra.mxu0 0
        %1138 = vmatprep.subr.bf16.mxu0 0
        %1139 = vmatpush1.bf16.msra.mxu0 0
        %1140 = vmatprep.subr.bf16.mxu0 0
        %1141 = vmatpush1.bf16.msra.mxu0 0
        %1142 = vmatprep.subr.bf16.mxu0 0
        %1143 = vmatpush1.bf16.msra.mxu0 %v1126
        %1144 = vmatprep.subr.bf16.mxu0 0
        %1145 = vmatpush2.bf16.msra.mxu0 0
        %1146 = vmatprep.subr.bf16.mxu0 0
        %1147 = vmatpush2.bf16.msra.mxu0 0
        %1148 = vmatprep.subr.bf16.mxu0 0
        %1149 = vmatpush2.bf16.msra.mxu0 0
        %1150 = vmatprep.subr.bf16.mxu0 0
        %1151 = vmatpush2.bf16.msra.mxu0 0
        %1152 = vmatprep.subr.bf16.mxu0 0
        %1153 = vmatpush2.bf16.msra.mxu0 0
        %1154 = vmatprep.subr.bf16.mxu0 0
        %1155 = vmatpush2.bf16.msra.mxu0 0
        %1156 = vmatprep.subr.bf16.mxu0 0
        %1157 = vmatpush2.bf16.msra.mxu0 0
        %1158 = vmatprep.subr.bf16.mxu0 0
        %1159 = vmatpush2.bf16.msra.mxu0 0
        %1160 = vmatprep.mubr.bf16.mxu0 0
        %1161 = vmatmul.mubr.bf16.gmra.mxu0 %v1123
        %v1162 = vpop.f32.mrf.mxu0
        %v1163 = vadd.f32 0.0, %v1162
        %v1164 = vpop.f32.mrf.mxu0
        %v1165 = vpop.f32.mrf.mxu0
        %v1166 = vpop.f32.mrf.mxu0
        %1167 = vdwg.mxu0
        %v1168 = vpack.c.bf16 %v1163, %v1163
        %1169 = vrot.lane.b32.xlu0 %v824, 104
        %v1170 = vpop.permute.xlu0 %1169
        %1171 = vrot.lane.b32.xlu0 %v941, 104
        %v1172 = vpop.permute.xlu0 %1171
        %v1174 = vsel %vm827, %v1170, 0
        %v1177 = vsel %vm827, %v1172, 0
        %1179 = vmatprep.subr.bf16.mxu0 0
        %1180 = vmatpush1.bf16.xpose.msra.mxu0 0
        %1181 = vmatprep.subr.bf16.mxu0 0
        %1182 = vmatpush1.bf16.xpose.msra.mxu0 0
        %1183 = vmatprep.subr.bf16.mxu0 0
        %1184 = vmatpush1.bf16.xpose.msra.mxu0 0
        %1185 = vmatprep.subr.bf16.mxu0 0
        %1186 = vmatpush1.bf16.xpose.msra.mxu0 0
        %1187 = vmatprep.subr.bf16.mxu0 0
        %1188 = vmatpush1.bf16.xpose.msra.mxu0 0
        %1189 = vmatprep.subr.bf16.mxu0 0
        %1190 = vmatpush1.bf16.xpose.msra.mxu0 0
        %1191 = vmatprep.subr.bf16.mxu0 0
        %1192 = vmatpush1.bf16.xpose.msra.mxu0 0
        %1193 = vmatprep.subr.bf16.mxu0 0
        %1194 = vmatpush1.bf16.xpose.msra.mxu0 %v1177
        %1195 = vmatprep.subr.bf16.mxu0 0
        %1196 = vmatpush2.bf16.xpose.msra.mxu0 0
        %1197 = vmatprep.subr.bf16.mxu0 0
        %1198 = vmatpush2.bf16.xpose.msra.mxu0 0
        %1199 = vmatprep.subr.bf16.mxu0 0
        %1200 = vmatpush2.bf16.xpose.msra.mxu0 0
        %1201 = vmatprep.subr.bf16.mxu0 0
        %1202 = vmatpush2.bf16.xpose.msra.mxu0 0
        %1203 = vmatprep.subr.bf16.mxu0 0
        %1204 = vmatpush2.bf16.xpose.msra.mxu0 0
        %1205 = vmatprep.subr.bf16.mxu0 0
        %1206 = vmatpush2.bf16.xpose.msra.mxu0 0
        %1207 = vmatprep.subr.bf16.mxu0 0
        %1208 = vmatpush2.bf16.xpose.msra.mxu0 0
        %1209 = vmatprep.subr.bf16.mxu0 0
        %1210 = vmatpush2.bf16.xpose.msra.mxu0 0
        %1211 = vmatprep.mubr.bf16.mxu0 0
        %1212 = vmatmul.mubr.bf16.gmra.mxu0 %v1174
        %v1213 = vpop.f32.mrf.mxu0
        %v1214 = vadd.f32 0.0, %v1213
        %v1215 = vpop.f32.mrf.mxu0
        %v1216 = vpop.f32.mrf.mxu0
        %v1217 = vpop.f32.mrf.mxu0
        %1218 = vdwg.mxu0
        %v1219 = vsel %vm827, %v1214, -inf
        %1220 = vmax.xlane.f32.xlu0 %v1219
        %v1221 = vpop.xlane.xlu0 %1220
        %v1222 = vsub.f32 %v1214, %v1221
        %v1223 = vmul.f32 %v1222, 1.442695
        %v1224 = vpow.pop %v1223
        %v1225 = vsel %vm827, %v1224, 0.0
        %1226 = vadd.xlane.f32.xlu0 %v1225
        %v1227 = vpop.xlane.xlu0 %1226
        %v1228 = vrcp.pop %v1227
        %v1229 = vmul.f32 %v1224, %v1228
        %v1230 = vpack.c.bf16 %v1229, %v1229
        %s1231 = scalar_lea.vmem %s610, 12 [#allocation20]
        %1232 = vst.msk [vmem:[%s1231] sm:$0xf] %vm886, %v1230
        %1233 = vrot.lane.b32.xlu0 %v1006, 104
        %v1234 = vpop.permute.xlu0 %1233
        %v1236 = vsel %vm827, %v1230, 0
        %v1239 = vsel %vm891, %v1234, 0
        %1241 = vmatprep.subr.bf16.mxu0 0
        %1242 = vmatpush1.bf16.msra.mxu0 0
        %1243 = vmatprep.subr.bf16.mxu0 0
        %1244 = vmatpush1.bf16.msra.mxu0 0
        %1245 = vmatprep.subr.bf16.mxu0 0
        %1246 = vmatpush1.bf16.msra.mxu0 0
        %1247 = vmatprep.subr.bf16.mxu0 0
        %1248 = vmatpush1.bf16.msra.mxu0 0
        %1249 = vmatprep.subr.bf16.mxu0 0
        %1250 = vmatpush1.bf16.msra.mxu0 0
        %1251 = vmatprep.subr.bf16.mxu0 0
        %1252 = vmatpush1.bf16.msra.mxu0 0
        %1253 = vmatprep.subr.bf16.mxu0 0
        %1254 = vmatpush1.bf16.msra.mxu0 0
        %1255 = vmatprep.subr.bf16.mxu0 0
        %1256 = vmatpush1.bf16.msra.mxu0 %v1239
        %1257 = vmatprep.subr.bf16.mxu0 0
        %1258 = vmatpush2.bf16.msra.mxu0 0
        %1259 = vmatprep.subr.bf16.mxu0 0
        %1260 = vmatpush2.bf16.msra.mxu0 0
        %1261 = vmatprep.subr.bf16.mxu0 0
        %1262 = vmatpush2.bf16.msra.mxu0 0
        %1263 = vmatprep.subr.bf16.mxu0 0
        %1264 = vmatpush2.bf16.msra.mxu0 0
        %1265 = vmatprep.subr.bf16.mxu0 0
        %1266 = vmatpush2.bf16.msra.mxu0 0
        %1267 = vmatprep.subr.bf16.mxu0 0
        %1268 = vmatpush2.bf16.msra.mxu0 0
        %1269 = vmatprep.subr.bf16.mxu0 0
        %1270 = vmatpush2.bf16.msra.mxu0 0
        %1271 = vmatprep.subr.bf16.mxu0 0
        %1272 = vmatpush2.bf16.msra.mxu0 0
        %1273 = vmatprep.mubr.bf16.mxu0 0
        %1274 = vmatmul.mubr.bf16.gmra.mxu0 %v1236
        %v1275 = vpop.f32.mrf.mxu0
        %v1276 = vadd.f32 0.0, %v1275
        %v1277 = vpop.f32.mrf.mxu0
        %v1278 = vpop.f32.mrf.mxu0
        %v1279 = vpop.f32.mrf.mxu0
        %1280 = vdwg.mxu0
        %v1281 = vpack.c.bf16 %v1276, %v1276
        %1283 = vrot.lane.b32.xlu0 %v1055, 8
        %v1284 = vpop.permute.xlu0 %1283
        %1286 = vrot.lane.b32.xlu0 %v1168, 16
        %v1287 = vpop.permute.xlu0 %1286
        %1289 = vrot.lane.b32.xlu0 %v1281, 24
        %v1290 = vpop.permute.xlu0 %1289
        %v1293 = vsel %vm827, %v935, %v1284
        %vm1294 = vcmask 130048
        %v1296 = vsel %vm1294, %v1293, %v1287
        %vm1297 = vcmask 195584
        %v1299 = vsel %vm1297, %v1296, %v1290
        %v1300 = vld [vmem:[%s9] sm:$0xf]
        %v1301 = vld [vmem:[%s9 + $0x4] sm:$0xf]
        %v1302 = vld [vmem:[%s9 + $0x8] sm:$0xf]
        %v1303 = vld [vmem:[%s9 + $0xc] sm:$0xf]
        %v1304 = vld [vmem:[%s10] sm:$0x1]
        %v1306 = vlaneseq
        %v1307 = vshrl.u32 %v1306, 7
        %v1308 = vsub.s32 0, %v1307
        %v1309 = vrot.slane %v1304, %v1308
        %v1315 = vunpack.c.l.b16 %v1300
        %v1316 = vunpack.c.l.b16 %v1301
        %v1317 = vunpack.c.l.b16 %v1302
        %v1318 = vunpack.c.l.b16 %v1303
        %v1319 = vpack.c.b16 %v1316, %v1315
        %v1320 = vpack.c.b16 %v1318, %v1317
        %v1323 = vsel %vm780, %v1299, 0
        %1325 = vmatprep.subr.bf16.mxu0 0
        %1326 = vmatpush1.bf16.msra.mxu0 0
        %1327 = vmatprep.subr.bf16.mxu0 0
        %1328 = vmatpush1.bf16.msra.mxu0 0
        %1329 = vmatprep.subr.bf16.mxu0 0
        %1330 = vmatpush1.bf16.msra.mxu0 0
        %1331 = vmatprep.subr.bf16.mxu0 0
        %1332 = vmatpush1.bf16.msra.mxu0 0
        %1333 = vmatprep.subr.bf16.mxu0 0
        %1334 = vmatpush1.bf16.msra.mxu0 0
        %1335 = vmatprep.subr.bf16.mxu0 0
        %1336 = vmatpush1.bf16.msra.mxu0 0
        %1337 = vmatprep.subr.bf16.mxu0 0
        %1338 = vmatpush1.bf16.msra.mxu0 %v1320
        %1339 = vmatprep.subr.bf16.mxu0 0
        %1340 = vmatpush1.bf16.msra.mxu0 %v1319
        %1341 = vmatprep.subr.bf16.mxu0 0
        %1342 = vmatpush2.bf16.msra.mxu0 0
        %1343 = vmatprep.subr.bf16.mxu0 0
        %1344 = vmatpush2.bf16.msra.mxu0 0
        %1345 = vmatprep.subr.bf16.mxu0 0
        %1346 = vmatpush2.bf16.msra.mxu0 0
        %1347 = vmatprep.subr.bf16.mxu0 0
        %1348 = vmatpush2.bf16.msra.mxu0 0
        %1349 = vmatprep.subr.bf16.mxu0 0
        %1350 = vmatpush2.bf16.msra.mxu0 0
        %1351 = vmatprep.subr.bf16.mxu0 0
        %1352 = vmatpush2.bf16.msra.mxu0 0
        %1353 = vmatprep.subr.bf16.mxu0 0
        %1354 = vmatpush2.bf16.msra.mxu0 0
        %1355 = vmatprep.subr.bf16.mxu0 0
        %1356 = vmatpush2.bf16.msra.mxu0 0
        %1357 = vmatprep.mubr.bf16.mxu0 0
        %1358 = vmatmul.mubr.bf16.gmra.mxu0 %v1323
        %v1359 = vpop.f32.mrf.mxu0
        %v1360 = vadd.f32 %v1309, %v1359
        %v1361 = vpop.f32.mrf.mxu0
        %v1362 = vpop.f32.mrf.mxu0
        %v1363 = vpop.f32.mrf.mxu0
        %1364 = vdwg.mxu0
        %1365 = vst.msk [vmem:[%s603] sm:$0xff] %vm780, %v1360
        %s1366 = sand.u32 %s309, 1
        %s1367 = scalar_lea.sflag [#allocation6], %s1366
        %s1368 = sand.u32 %s309, 1
        %s1369 = smul.addr %s1368, 8
        %s1370 = scalar_lea.vmem [#allocation19], %s1369
        %s1371 = sand.u32 %s337, 1
        %s1372 = scalar_lea.sflag [#allocation21], %s1371
        %s1373 = sand.u32 %s337, 1
        %s1374 = smul.addr %s1373, 16
        %s1375 = scalar_lea.vmem [#allocation20], %s1374
        // Predicated region
        $region105: #{tpu_custom_call.1} parent=63 // pred_check
          %p1376 = pneg %p319
        $region106: #{tpu_custom_call.1} parent=63 // pred_check_branch
          %1378 = sbr.rel (%p1376) target = $region108
        $region107: #{tpu_custom_call.1} parent=63 // pred_region
          %s1380 = ssub.s32 128, 128
          %1381 = vsyncadd %s1367, %s1380
          %s1382 = sadd.s32 %s44, %s43
          %s1383 = smul.addr %s1382, 128
          %s1384 = scalar_lea.hbm %s11, %s1383
          %s1386 = sshll.u32 %s1370, 4
          %s1387 = int_to_ptr.vmem [resolvable:$true] %s1386
          %1389 = dma.vmem_to_hbm [thread:$0]  %s1387, 128, %s1384, %s1367
        $region108: #{tpu_custom_call.1} parent=63 // pred_fallthru
          _
        // Predicated region
        $region109: #{tpu_custom_call.1} parent=63 // pred_check
          %p1390 = pneg %p347
        $region110: #{tpu_custom_call.1} parent=63 // pred_check_branch
          %1392 = sbr.rel (%p1390) target = $region112
        $region111: #{tpu_custom_call.1} parent=63 // pred_region
          %s1394 = ssub.s32 256, 256
          %1395 = vsyncadd %s1372, %s1394
          %s1396 = smul.addr %s43, 4
          %s1397 = sadd.s32 %s44, %s1396
          %s1398 = smul.addr %s1397, 64
          %s1399 = scalar_lea.hbm %s12, %s1398
          %s1400 = sshll.u32 %s1375, 4
          %s1401 = int_to_ptr.vmem [resolvable:$true] %s1400
          %1406 = dma.vmem_to_hbm [thread:$0]  %s1401, 256, %s1399, %s1372, 64, 64, 4
        $region112: #{tpu_custom_call.1} parent=63 // pred_fallthru
          _
      $region64: #{tpu_custom_call.1} parent=5 // pred_fallthru
        _
      %p1407 = scmp.le.s32.totalorder 2, %s34
      // Predicated region
      $region113: #{tpu_custom_call.1} parent=5 // pred_check
        %p1408 = pneg %p1407
      $region114: #{tpu_custom_call.1} parent=5 // pred_check_branch
        %1410 = sbr.rel (%p1408) target = $region116
      $region115: #{tpu_custom_call.1} parent=5 // pred_region
        %s1411 = ssub.s32 %s34, 2
        // Predicated region
        $region117: #{tpu_custom_call.1} parent=115 // pred_check
          %p1412 = pneg %p325
        $region118: #{tpu_custom_call.1} parent=115 // pred_check_branch
          %1414 = sbr.rel (%p1412) target = $region120
        $region119: #{tpu_custom_call.1} parent=115 // pred_region
          %s1415 = sand.u32 %s310, 1
          %s1416 = scalar_lea.sflag [#allocation6], %s1415
          %s1417 = sand.u32 %s310, 1
          %s1418 = smul.addr %s1417, 8
          %s1419 = scalar_lea.vmem [#allocation19], %s1418
          %1420 = dma.done %s1416, 128
        $region120: #{tpu_custom_call.1} parent=115 // pred_fallthru
          _
        // Predicated region
        $region121: #{tpu_custom_call.1} parent=115 // pred_check
          %p1421 = pneg %p353
        $region122: #{tpu_custom_call.1} parent=115 // pred_check_branch
          %1423 = sbr.rel (%p1421) target = $region124
        $region123: #{tpu_custom_call.1} parent=115 // pred_region
          %s1424 = sand.u32 %s338, 1
          %s1425 = scalar_lea.sflag [#allocation21], %s1424
          %s1426 = sand.u32 %s338, 1
          %s1427 = smul.addr %s1426, 16
          %s1428 = scalar_lea.vmem [#allocation20], %s1427
          %1429 = dma.done %s1425, 256
        $region124: #{tpu_custom_call.1} parent=115 // pred_fallthru
          _
      $region116: #{tpu_custom_call.1} parent=5 // pred_fallthru
        _
    $region6: #{tpu_custom_call.1} parent=1 // loop_footer
      %s38 = sadd.s32 1, %s34
    $region7: #{tpu_custom_call.1} parent=1 // loop_footer_branch
      %33 = sbr.rel target = $region3
    $region8: #{tpu_custom_call.1} parent=1 // loop_exit
      _
    %1430 = vsyncpa [#allocation5], 1
    %s1431 = scalar_lea.sflag [#allocation5], 1
    %1432 = vsyncpa %s1431, 1
    %1433 = vsyncpa [#allocation8], 1
    %s1434 = scalar_lea.sflag [#allocation8], 1
    %1435 = vsyncpa %s1434, 1
    %1436 = vsyncpa [#allocation11], 1
    %1437 = vsyncpa [#allocation14], 1
    %1438 = vsyncpa [#allocation17], 1
    %1439 = vsyncpa [#allocation6], 1
    %s1440 = scalar_lea.sflag [#allocation6], 1
    %1441 = vsyncpa %s1440, 1
    %1442 = vsyncpa [#allocation21], 1
    %s1443 = scalar_lea.sflag [#allocation21], 1
    %1444 = vsyncpa %s1443, 1

</llo_original>
